<compile_context>
chip_gen: v7x
topology: tpu7x:2x2x1
jax: 0.10.0
libtpu: 0.0.40
codegen_flags: <defaults>
</compile_context>

<pallas_src>
import math
import functools

import jax
import jax.numpy as jnp
from jax.experimental import pallas as pl
from jax.experimental.pallas import tpu as pltpu


def _encoder_layer_kernel(x_ref, g1_ref, be1_ref, wqkv_ref, bqkv_ref,
                          woh_ref, bo_ref, g2_ref, be2_ref,
                          w1_ref, bb1_ref, w2_ref, bb2_ref, o_ref,
                          *, num_heads):
    """Processes one (Bt, S, E) batch block fully in VMEM."""
    Bt, S, E = x_ref.shape
    H = num_heads
    Dh = E // H
    T = Bt * S
    eps = 1e-5

    x = x_ref[...].reshape(T, E)                       # (T, E) fp32

    def layer_norm(v, g, b):
        mu = jnp.mean(v, axis=-1, keepdims=True)
        var = jnp.mean((v - mu) ** 2, axis=-1, keepdims=True)
        return (v - mu) * jax.lax.rsqrt(var + eps) * g + b

    # ---- pre-norm 1 + fused QKV projection (bf16 MXU, fp32 accumulate) ----
    xn = layer_norm(x, g1_ref[0], be1_ref[0])
    qkv = jnp.dot(xn.astype(jnp.bfloat16), wqkv_ref[...],
                  preferred_element_type=jnp.float32) + bqkv_ref[0]   # (T, 3E)
    qkv = qkv.reshape(Bt, S, 3 * E)

    # head split -> (H*Bt, S, Dh); leading index = h*Bt + b (no transposes needed)
    def split_heads(col0):
        parts = [qkv[:, :, col0 + h * Dh: col0 + (h + 1) * Dh] for h in range(H)]
        return jnp.concatenate(parts, axis=0).astype(jnp.bfloat16)

    q = split_heads(0)          # 1/sqrt(Dh) already folded into w_qkv / b_qkv
    k = split_heads(E)
    v = split_heads(2 * E)

    # ---- attention, batched over (head, batch); softmax kept in fp32 ----
    s = jnp.einsum('bqd,bkd->bqk', q, k,
                   preferred_element_type=jnp.float32)                # (H*Bt, S, S)
    m = jnp.max(s, axis=-1, keepdims=True)
    p = jnp.exp(s - m)
    denom = jnp.sum(p, axis=-1, keepdims=True)
    p = p * pl.reciprocal(denom, approx=True)
    o_heads = jnp.einsum('bqk,bkd->bqd', p.astype(jnp.bfloat16), v,
                         preferred_element_type=jnp.float32)          # (H*Bt, S, Dh)

    # ---- output projection folded per head: attn = sum_h o_h @ Wo[h] + b_o ----
    o_heads = o_heads.reshape(H, T, Dh).astype(jnp.bfloat16)
    attn = jnp.einsum('hqd,hde->hqe', o_heads, woh_ref[...],
                      preferred_element_type=jnp.float32)             # (H, T, E)
    attn = jnp.sum(attn, axis=0) + bo_ref[0]                          # (T, E)

    # dropout == identity (eval mode)
    x1 = x + attn

    # ---- pre-norm 2 + feed forward: Linear(E,4E) -> ReLU -> Linear(4E,E) ----
    xn2 = layer_norm(x1, g2_ref[0], be2_ref[0])
    h1 = jnp.dot(xn2.astype(jnp.bfloat16), w1_ref[...],
                 preferred_element_type=jnp.float32) + bb1_ref[0]
    h1 = jnp.maximum(h1, 0.0)
    ff = jnp.dot(h1.astype(jnp.bfloat16), w2_ref[...],
                 preferred_element_type=jnp.float32) + bb2_ref[0]

    o_ref[...] = (x1 + ff).reshape(Bt, S, E).astype(o_ref.dtype)


def transformer_encoder_layer(x_sbe, params, num_heads, batch_block=None):
    """x_sbe: (S, B, E) float32 — same layout as the PyTorch module input.
    `params` must be the output of `prepare_params` (bf16 weights, folded scale).
    `batch_block`: batch elements per grid step (default: whole batch — best for
    small shapes; for large B on multi-core chips choose a divisor of B)."""
    S, B, E = x_sbe.shape
    H = num_heads
    Dh = E // H
    x = jnp.transpose(x_sbe, (1, 0, 2))                # (B, S, E) for the kernel

    Bt = B if batch_block is None else batch_block
    assert B % Bt == 0, "batch_block must divide batch"
    grid = (B // Bt,)

    def _w(shape):
        nd = len(shape)
        return pl.BlockSpec(shape, lambda i, _nd=nd: (0,) * _nd)

    p = params
    kernel = functools.partial(_encoder_layer_kernel, num_heads=H)

    # ---- advisory cost estimate (whole call) ----
    T = B * S
    flops = 24 * T * E * E + 4 * B * S * S * E
    transcendentals = H * B * S * S + 2 * T + H * B * S
    weight_bytes = sum(int(v.size) * v.dtype.itemsize for v in p.values())
    io_bytes = 2 * B * S * E * 4
    cost = pl.CostEstimate(flops=int(flops),
                           transcendentals=int(transcendentals),
                           bytes_accessed=int(io_bytes + weight_bytes))

    # ---- explicit VMEM budget computed from the block sizes (with margin) ----
    t_blk = Bt * S
    block_bytes = Bt * S * E * 4
    inter_bytes = (4 * t_blk * (3 * E + 4 * E + 4 * E)      # qkv / h1 / partial sums
                   + 8 * H * Bt * S * S                     # scores + probs
                   + 4 * H * t_blk * E)                     # per-head out-proj partials
    vmem_needed = 8 * block_bytes + 2 * weight_bytes + 2 * inter_bytes
    vmem_limit = int(min(64 << 20, max(16 << 20, vmem_needed)))

    out = pl.pallas_call(
        kernel,
        out_shape=jax.ShapeDtypeStruct((B, S, E), x.dtype),
        grid=grid,
        in_specs=[
            pl.BlockSpec((Bt, S, E), lambda i: (i, 0, 0)),  # x, one batch block / step
            _w((1, E)), _w((1, E)),                         # LN1 gamma / beta
            _w((E, 3 * E)), _w((1, 3 * E)),                 # in-proj W (bf16) / b
            _w((H, Dh, E)), _w((1, E)),                     # out-proj per-head W / b
            _w((1, E)), _w((1, E)),                         # LN2 gamma / beta
            _w((E, 4 * E)), _w((1, 4 * E)),                 # FFN W1 (bf16) / b1
            _w((4 * E, E)), _w((1, E)),                     # FFN W2 (bf16) / b2
        ],
        out_specs=pl.BlockSpec((Bt, S, E), lambda i: (i, 0, 0)),
        compiler_params=pltpu.CompilerParams(
            dimension_semantics=("parallel",),
            vmem_limit_bytes=vmem_limit),
        cost_estimate=cost,
    )(x, p["ln1_g"], p["ln1_b"], p["w_qkv"], p["b_qkv"],
      p["wo_h"], p["b_o"], p["ln2_g"], p["ln2_b"],
      p["w_ff1"], p["b_ff1"], p["w_ff2"], p["b_ff2"])
    return jnp.transpose(out, (1, 0, 2))                    # back to (S, B, E)


def init_params(key, embedding_dim):
    """Deterministic synthetic fp32 parameters (weights stored in x @ W layout)."""
    E = embedding_dim
    keys = jax.random.split(key, 6)
    scale = 0.02
    return {
        "ln1_g": jnp.ones((1, E), jnp.float32),
        "ln1_b": jnp.zeros((1, E), jnp.float32),
        "w_qkv": scale * jax.random.normal(keys[0], (E, 3 * E), jnp.float32),
        "b_qkv": scale * jax.random.normal(keys[1], (1, 3 * E), jnp.float32),
        "w_o":   scale * jax.random.normal(keys[2], (E, E), jnp.float32),
        "b_o":   jnp.zeros((1, E), jnp.float32),
        "ln2_g": jnp.ones((1, E), jnp.float32),
        "ln2_b": jnp.zeros((1, E), jnp.float32),
        "w_ff1": scale * jax.random.normal(keys[3], (E, 4 * E), jnp.float32),
        "b_ff1": scale * jax.random.normal(keys[4], (1, 4 * E), jnp.float32),
        "w_ff2": scale * jax.random.normal(keys[5], (4 * E, E), jnp.float32),
        "b_ff2": jnp.zeros((1, E), jnp.float32),
    }


def prepare_params(params, embedding_dim, num_heads):
    """Kernel-ready params: fold 1/sqrt(Dh) into the Q projection, reshape the
    output projection per head, and store the big matmul weights in bf16."""
    E = embedding_dim
    Dh = E // num_heads
    inv_sqrt_dh = 1.0 / math.sqrt(Dh)
    w_qkv = params["w_qkv"].at[:, :E].multiply(inv_sqrt_dh)
    b_qkv = params["b_qkv"].at[:, :E].multiply(inv_sqrt_dh)
    wo_h = params["w_o"].reshape(num_heads, Dh, E)
    return {
        "ln1_g": params["ln1_g"], "ln1_b": params["ln1_b"],
        "w_qkv": w_qkv.astype(jnp.bfloat16), "b_qkv": b_qkv,
        "wo_h": wo_h.astype(jnp.bfloat16), "b_o": params["b_o"],
        "ln2_g": params["ln2_g"], "ln2_b": params["ln2_b"],
        "w_ff1": params["w_ff1"].astype(jnp.bfloat16), "b_ff1": params["b_ff1"],
        "w_ff2": params["w_ff2"].astype(jnp.bfloat16), "b_ff2": params["b_ff2"],
    }


if __name__ == "__main__":
    # Small shapes: seq=8, batch=2, embedding_dim=32, num_heads=4
    S, B, E, H = 8, 2, 32, 4
    key = jax.random.PRNGKey(0)
    k_x, k_p = jax.random.split(key)
    x = jax.random.normal(k_x, (S, B, E), jnp.float32)      # (seq, batch, embed)
    params = prepare_params(init_params(k_p, E), E, H)

    # TODO(synk): dropout is treated as identity (eval mode); no RNG dropout in-kernel.
    out = transformer_encoder_layer(x, params, num_heads=H)
    out = jax.block_until_ready(out)
    assert out.shape == (S, B, E)
    assert jnp.all(jnp.isfinite(out))
    print("KERNEL_OK")
</pallas_src>

<mosaic_0001>
module attributes {stable_mosaic.version = 11 : i64} {
  func.func @_encoder_layer_kernel(%arg0: i32, %arg1: memref<2x8x32xf32, #tpu.memory_space<vmem>>, %arg2: memref<1x32xf32, #tpu.memory_space<vmem>>, %arg3: memref<1x32xf32, #tpu.memory_space<vmem>>, %arg4: memref<32x96xbf16, #tpu.memory_space<vmem>>, %arg5: memref<1x96xf32, #tpu.memory_space<vmem>>, %arg6: memref<4x8x32xbf16, #tpu.memory_space<vmem>>, %arg7: memref<1x32xf32, #tpu.memory_space<vmem>>, %arg8: memref<1x32xf32, #tpu.memory_space<vmem>>, %arg9: memref<1x32xf32, #tpu.memory_space<vmem>>, %arg10: memref<32x128xbf16, #tpu.memory_space<vmem>>, %arg11: memref<1x128xf32, #tpu.memory_space<vmem>>, %arg12: memref<128x32xbf16, #tpu.memory_space<vmem>>, %arg13: memref<1x32xf32, #tpu.memory_space<vmem>>, %arg14: memref<2x8x32xf32, #tpu.memory_space<vmem>>) attributes {dimension_semantics = [#tpu.dimension_semantics<parallel>], iteration_bounds = array<i64: 1>, scalar_prefetch = 0 : i64, scratch_operands = 0 : i64, tpu.core_type = #tpu.core_type<tc>, window_params = [{transform_indices = @transform_0, window_bounds = array<i64: 2, 8, 32>}, {pipeline_mode = #tpu.pipeline_mode<synchronous>, transform_indices = @transform_1, window_bounds = array<i64: 1, 32>}, {pipeline_mode = #tpu.pipeline_mode<synchronous>, transform_indices = @transform_2, window_bounds = array<i64: 1, 32>}, {pipeline_mode = #tpu.pipeline_mode<synchronous>, transform_indices = @transform_3, window_bounds = array<i64: 32, 96>}, {pipeline_mode = #tpu.pipeline_mode<synchronous>, transform_indices = @transform_4, window_bounds = array<i64: 1, 96>}, {pipeline_mode = #tpu.pipeline_mode<synchronous>, transform_indices = @transform_5, window_bounds = array<i64: 4, 8, 32>}, {pipeline_mode = #tpu.pipeline_mode<synchronous>, transform_indices = @transform_6, window_bounds = array<i64: 1, 32>}, {pipeline_mode = #tpu.pipeline_mode<synchronous>, transform_indices = @transform_7, window_bounds = array<i64: 1, 32>}, {pipeline_mode = #tpu.pipeline_mode<synchronous>, transform_indices = @transform_8, window_bounds = array<i64: 1, 32>}, {pipeline_mode = #tpu.pipeline_mode<synchronous>, transform_indices = @transform_9, window_bounds = array<i64: 32, 128>}, {pipeline_mode = #tpu.pipeline_mode<synchronous>, transform_indices = @transform_10, window_bounds = array<i64: 1, 128>}, {pipeline_mode = #tpu.pipeline_mode<synchronous>, transform_indices = @transform_11, window_bounds = array<i64: 128, 32>}, {pipeline_mode = #tpu.pipeline_mode<synchronous>, transform_indices = @transform_12, window_bounds = array<i64: 1, 32>}, {transform_indices = @transform_13, window_bounds = array<i64: 2, 8, 32>}]} {
    %c0 = arith.constant 0 : index
    %c0_0 = arith.constant 0 : index
    %c0_1 = arith.constant 0 : index
    %0 = vector.load %arg1[%c0, %c0_0, %c0_1] : memref<2x8x32xf32, #tpu.memory_space<vmem>>, vector<2x8x32xf32>
    %1 = vector.shape_cast %0 : vector<2x8x32xf32> to vector<16x32xf32>
    %c0_2 = arith.constant 0 : index
    %c0_3 = arith.constant 0 : index
    %2 = vector.load %arg2[%c0_2, %c0_3] : memref<1x32xf32, #tpu.memory_space<vmem>>, vector<1x32xf32>
    %3 = vector.shape_cast %2 : vector<1x32xf32> to vector<32xf32>
    %c0_4 = arith.constant 0 : index
    %c0_5 = arith.constant 0 : index
    %4 = vector.load %arg3[%c0_4, %c0_5] : memref<1x32xf32, #tpu.memory_space<vmem>>, vector<1x32xf32>
    %5 = vector.shape_cast %4 : vector<1x32xf32> to vector<32xf32>
    %cst = arith.constant dense<0.000000e+00> : vector<16xf32>
    %6 = vector.multi_reduction <add>, %1, %cst [1] : vector<16x32xf32> to vector<16xf32>
    %7 = vector.shape_cast %6 : vector<16xf32> to vector<16x1xf32>
    %cst_6 = arith.constant 3.200000e+01 : f32
    %8 = vector.broadcast %cst_6 : f32 to vector<16x1xf32>
    %9 = arith.divf %7, %8 : vector<16x1xf32>
    %10 = vector.broadcast %9 : vector<16x1xf32> to vector<16x32xf32>
    %11 = arith.subf %1, %10 : vector<16x32xf32>
    %12 = arith.mulf %11, %11 : vector<16x32xf32>
    %cst_7 = arith.constant dense<0.000000e+00> : vector<16xf32>
    %13 = vector.multi_reduction <add>, %12, %cst_7 [1] : vector<16x32xf32> to vector<16xf32>
    %14 = vector.shape_cast %13 : vector<16xf32> to vector<16x1xf32>
    %cst_8 = arith.constant 3.200000e+01 : f32
    %15 = vector.broadcast %cst_8 : f32 to vector<16x1xf32>
    %16 = arith.divf %14, %15 : vector<16x1xf32>
    %17 = vector.broadcast %9 : vector<16x1xf32> to vector<16x32xf32>
    %18 = arith.subf %1, %17 : vector<16x32xf32>
    %cst_9 = arith.constant 9.99999974E-6 : f32
    %19 = vector.broadcast %cst_9 : f32 to vector<16x1xf32>
    %20 = arith.addf %16, %19 : vector<16x1xf32>
    %21 = math.rsqrt %20 : vector<16x1xf32>
    %22 = vector.broadcast %21 : vector<16x1xf32> to vector<16x32xf32>
    %23 = arith.mulf %18, %22 : vector<16x32xf32>
    %24 = vector.shape_cast %3 : vector<32xf32> to vector<1x32xf32>
    %25 = vector.broadcast %24 : vector<1x32xf32> to vector<16x32xf32>
    %26 = arith.mulf %23, %25 : vector<16x32xf32>
    %27 = vector.shape_cast %5 : vector<32xf32> to vector<1x32xf32>
    %28 = vector.broadcast %27 : vector<1x32xf32> to vector<16x32xf32>
    %29 = arith.addf %26, %28 : vector<16x32xf32>
    %30 = arith.truncf %29 : vector<16x32xf32> to vector<16x32xbf16>
    %c0_10 = arith.constant 0 : index
    %c0_11 = arith.constant 0 : index
    %31 = vector.load %arg4[%c0_10, %c0_11] : memref<32x96xbf16, #tpu.memory_space<vmem>>, vector<32x96xbf16>
    %cst_12 = arith.constant dense<0.000000e+00> : vector<16x96xf32>
    %32 = tpu.matmul %30, %31, %cst_12 {dimension_numbers = #tpu.dot_dimension_numbers<[1], [0], [0], [1], [0, 0, 1, 1], [], []>} : vector<16x32xbf16>, vector<32x96xbf16>, vector<16x96xf32> -> vector<16x96xf32>
    %c0_13 = arith.constant 0 : index
    %c0_14 = arith.constant 0 : index
    %33 = vector.load %arg5[%c0_13, %c0_14] : memref<1x96xf32, #tpu.memory_space<vmem>>, vector<1x96xf32>
    %34 = vector.shape_cast %33 : vector<1x96xf32> to vector<96xf32>
    %35 = vector.shape_cast %34 : vector<96xf32> to vector<1x96xf32>
    %36 = vector.broadcast %35 : vector<1x96xf32> to vector<16x96xf32>
    %37 = arith.addf %32, %36 : vector<16x96xf32>
    %38 = vector.shape_cast %37 : vector<16x96xf32> to vector<2x8x96xf32>
    %39 = vector.extract_strided_slice %38 {offsets = [0, 0, 0], sizes = [2, 8, 8], strides = [1, 1, 1]} : vector<2x8x96xf32> to vector<2x8x8xf32>
    %40 = vector.extract_strided_slice %38 {offsets = [0, 0, 8], sizes = [2, 8, 8], strides = [1, 1, 1]} : vector<2x8x96xf32> to vector<2x8x8xf32>
    %41 = vector.extract_strided_slice %38 {offsets = [0, 0, 16], sizes = [2, 8, 8], strides = [1, 1, 1]} : vector<2x8x96xf32> to vector<2x8x8xf32>
    %42 = vector.extract_strided_slice %38 {offsets = [0, 0, 24], sizes = [2, 8, 8], strides = [1, 1, 1]} : vector<2x8x96xf32> to vector<2x8x8xf32>
    %43 = tpu.concatenate %39, %40, %41, %42 in 0 : vector<2x8x8xf32>, vector<2x8x8xf32>, vector<2x8x8xf32>, vector<2x8x8xf32> -> vector<8x8x8xf32>
    %44 = arith.truncf %43 : vector<8x8x8xf32> to vector<8x8x8xbf16>
    %45 = vector.extract_strided_slice %38 {offsets = [0, 0, 32], sizes = [2, 8, 8], strides = [1, 1, 1]} : vector<2x8x96xf32> to vector<2x8x8xf32>
    %46 = vector.extract_strided_slice %38 {offsets = [0, 0, 40], sizes = [2, 8, 8], strides = [1, 1, 1]} : vector<2x8x96xf32> to vector<2x8x8xf32>
    %47 = vector.extract_strided_slice %38 {offsets = [0, 0, 48], sizes = [2, 8, 8], strides = [1, 1, 1]} : vector<2x8x96xf32> to vector<2x8x8xf32>
    %48 = vector.extract_strided_slice %38 {offsets = [0, 0, 56], sizes = [2, 8, 8], strides = [1, 1, 1]} : vector<2x8x96xf32> to vector<2x8x8xf32>
    %49 = tpu.concatenate %45, %46, %47, %48 in 0 : vector<2x8x8xf32>, vector<2x8x8xf32>, vector<2x8x8xf32>, vector<2x8x8xf32> -> vector<8x8x8xf32>
    %50 = arith.truncf %49 : vector<8x8x8xf32> to vector<8x8x8xbf16>
    %51 = vector.extract_strided_slice %38 {offsets = [0, 0, 64], sizes = [2, 8, 8], strides = [1, 1, 1]} : vector<2x8x96xf32> to vector<2x8x8xf32>
    %52 = vector.extract_strided_slice %38 {offsets = [0, 0, 72], sizes = [2, 8, 8], strides = [1, 1, 1]} : vector<2x8x96xf32> to vector<2x8x8xf32>
    %53 = vector.extract_strided_slice %38 {offsets = [0, 0, 80], sizes = [2, 8, 8], strides = [1, 1, 1]} : vector<2x8x96xf32> to vector<2x8x8xf32>
    %54 = vector.extract_strided_slice %38 {offsets = [0, 0, 88], sizes = [2, 8, 8], strides = [1, 1, 1]} : vector<2x8x96xf32> to vector<2x8x8xf32>
    %55 = tpu.concatenate %51, %52, %53, %54 in 0 : vector<2x8x8xf32>, vector<2x8x8xf32>, vector<2x8x8xf32>, vector<2x8x8xf32> -> vector<8x8x8xf32>
    %56 = arith.truncf %55 : vector<8x8x8xf32> to vector<8x8x8xbf16>
    "tpu.trace_start"() <{level = 10 : i32, message = "bqd,bkd->bqk"}> : () -> ()
    %cst_15 = arith.constant dense<0.000000e+00> : vector<8x8x8xf32>
    %57 = tpu.matmul %44, %50, %cst_15 {dimension_numbers = #tpu.dot_dimension_numbers<[2], [2], [1], [1], [0, 0, 0, 1, 1, 1], [0], [0]>} : vector<8x8x8xbf16>, vector<8x8x8xbf16>, vector<8x8x8xf32> -> vector<8x8x8xf32>
    "tpu.trace_stop"() : () -> ()
    %cst_16 = arith.constant dense<0xFF800000> : vector<8x8xf32>
    %58 = vector.multi_reduction <maximumf>, %57, %cst_16 [2] : vector<8x8x8xf32> to vector<8x8xf32>
    %59 = vector.shape_cast %58 : vector<8x8xf32> to vector<8x8x1xf32>
    %60 = vector.broadcast %59 : vector<8x8x1xf32> to vector<8x8x8xf32>
    %61 = arith.subf %57, %60 : vector<8x8x8xf32>
    %62 = math.exp %61 : vector<8x8x8xf32>
    %cst_17 = arith.constant dense<0.000000e+00> : vector<8x8xf32>
    %63 = vector.multi_reduction <add>, %62, %cst_17 [2] : vector<8x8x8xf32> to vector<8x8xf32>
    %64 = vector.shape_cast %63 : vector<8x8xf32> to vector<8x8x1xf32>
    %65 = tpu.reciprocal %64 {approx = true} : vector<8x8x1xf32> -> vector<8x8x1xf32>
    %66 = vector.broadcast %65 : vector<8x8x1xf32> to vector<8x8x8xf32>
    %67 = arith.mulf %62, %66 : vector<8x8x8xf32>
    %68 = arith.truncf %67 : vector<8x8x8xf32> to vector<8x8x8xbf16>
    "tpu.trace_start"() <{level = 10 : i32, message = "bqk,bkd->bqd"}> : () -> ()
    %cst_18 = arith.constant dense<0.000000e+00> : vector<8x8x8xf32>
    %69 = tpu.matmul %68, %56, %cst_18 {dimension_numbers = #tpu.dot_dimension_numbers<[2], [1], [1], [2], [0, 0, 0, 1, 1, 2], [0], [0]>} : vector<8x8x8xbf16>, vector<8x8x8xbf16>, vector<8x8x8xf32> -> vector<8x8x8xf32>
    "tpu.trace_stop"() : () -> ()
    %70 = vector.shape_cast %69 : vector<8x8x8xf32> to vector<4x16x8xf32>
    %71 = arith.truncf %70 : vector<4x16x8xf32> to vector<4x16x8xbf16>
    %c0_19 = arith.constant 0 : index
    %c0_20 = arith.constant 0 : index
    %c0_21 = arith.constant 0 : index
    %72 = vector.load %arg6[%c0_19, %c0_20, %c0_21] : memref<4x8x32xbf16, #tpu.memory_space<vmem>>, vector<4x8x32xbf16>
    "tpu.trace_start"() <{level = 10 : i32, message = "hqd,hde->hqe"}> : () -> ()
    %cst_22 = arith.constant dense<0.000000e+00> : vector<4x16x32xf32>
    %73 = tpu.matmul %71, %72, %cst_22 {dimension_numbers = #tpu.dot_dimension_numbers<[2], [1], [1], [2], [0, 0, 0, 1, 1, 2], [0], [0]>} : vector<4x16x8xbf16>, vector<4x8x32xbf16>, vector<4x16x32xf32> -> vector<4x16x32xf32>
    "tpu.trace_stop"() : () -> ()
    %cst_23 = arith.constant dense<0.000000e+00> : vector<16x32xf32>
    %74 = vector.multi_reduction <add>, %73, %cst_23 [0] : vector<4x16x32xf32> to vector<16x32xf32>
    %c0_24 = arith.constant 0 : index
    %c0_25 = arith.constant 0 : index
    %75 = vector.load %arg7[%c0_24, %c0_25] : memref<1x32xf32, #tpu.memory_space<vmem>>, vector<1x32xf32>
    %76 = vector.shape_cast %75 : vector<1x32xf32> to vector<32xf32>
    %77 = vector.shape_cast %76 : vector<32xf32> to vector<1x32xf32>
    %78 = vector.broadcast %77 : vector<1x32xf32> to vector<16x32xf32>
    %79 = arith.addf %74, %78 : vector<16x32xf32>
    %80 = arith.addf %1, %79 : vector<16x32xf32>
    %c0_26 = arith.constant 0 : index
    %c0_27 = arith.constant 0 : index
    %81 = vector.load %arg8[%c0_26, %c0_27] : memref<1x32xf32, #tpu.memory_space<vmem>>, vector<1x32xf32>
    %82 = vector.shape_cast %81 : vector<1x32xf32> to vector<32xf32>
    %c0_28 = arith.constant 0 : index
    %c0_29 = arith.constant 0 : index
    %83 = vector.load %arg9[%c0_28, %c0_29] : memref<1x32xf32, #tpu.memory_space<vmem>>, vector<1x32xf32>
    %84 = vector.shape_cast %83 : vector<1x32xf32> to vector<32xf32>
    %cst_30 = arith.constant dense<0.000000e+00> : vector<16xf32>
    %85 = vector.multi_reduction <add>, %80, %cst_30 [1] : vector<16x32xf32> to vector<16xf32>
    %86 = vector.shape_cast %85 : vector<16xf32> to vector<16x1xf32>
    %cst_31 = arith.constant 3.200000e+01 : f32
    %87 = vector.broadcast %cst_31 : f32 to vector<16x1xf32>
    %88 = arith.divf %86, %87 : vector<16x1xf32>
    %89 = vector.broadcast %88 : vector<16x1xf32> to vector<16x32xf32>
    %90 = arith.subf %80, %89 : vector<16x32xf32>
    %91 = arith.mulf %90, %90 : vector<16x32xf32>
    %cst_32 = arith.constant dense<0.000000e+00> : vector<16xf32>
    %92 = vector.multi_reduction <add>, %91, %cst_32 [1] : vector<16x32xf32> to vector<16xf32>
    %93 = vector.shape_cast %92 : vector<16xf32> to vector<16x1xf32>
    %cst_33 = arith.constant 3.200000e+01 : f32
    %94 = vector.broadcast %cst_33 : f32 to vector<16x1xf32>
    %95 = arith.divf %93, %94 : vector<16x1xf32>
    %96 = vector.broadcast %88 : vector<16x1xf32> to vector<16x32xf32>
    %97 = arith.subf %80, %96 : vector<16x32xf32>
    %cst_34 = arith.constant 9.99999974E-6 : f32
    %98 = vector.broadcast %cst_34 : f32 to vector<16x1xf32>
    %99 = arith.addf %95, %98 : vector<16x1xf32>
    %100 = math.rsqrt %99 : vector<16x1xf32>
    %101 = vector.broadcast %100 : vector<16x1xf32> to vector<16x32xf32>
    %102 = arith.mulf %97, %101 : vector<16x32xf32>
    %103 = vector.shape_cast %82 : vector<32xf32> to vector<1x32xf32>
    %104 = vector.broadcast %103 : vector<1x32xf32> to vector<16x32xf32>
    %105 = arith.mulf %102, %104 : vector<16x32xf32>
    %106 = vector.shape_cast %84 : vector<32xf32> to vector<1x32xf32>
    %107 = vector.broadcast %106 : vector<1x32xf32> to vector<16x32xf32>
    %108 = arith.addf %105, %107 : vector<16x32xf32>
    %109 = arith.truncf %108 : vector<16x32xf32> to vector<16x32xbf16>
    %c0_35 = arith.constant 0 : index
    %c0_36 = arith.constant 0 : index
    %110 = vector.load %arg10[%c0_35, %c0_36] : memref<32x128xbf16, #tpu.memory_space<vmem>>, vector<32x128xbf16>
    %cst_37 = arith.constant dense<0.000000e+00> : vector<16x128xf32>
    %111 = tpu.matmul %109, %110, %cst_37 {dimension_numbers = #tpu.dot_dimension_numbers<[1], [0], [0], [1], [0, 0, 1, 1], [], []>} : vector<16x32xbf16>, vector<32x128xbf16>, vector<16x128xf32> -> vector<16x128xf32>
    %c0_38 = arith.constant 0 : index
    %c0_39 = arith.constant 0 : index
    %112 = vector.load %arg11[%c0_38, %c0_39] : memref<1x128xf32, #tpu.memory_space<vmem>>, vector<1x128xf32>
    %113 = vector.shape_cast %112 : vector<1x128xf32> to vector<128xf32>
    %114 = vector.shape_cast %113 : vector<128xf32> to vector<1x128xf32>
    %115 = vector.broadcast %114 : vector<1x128xf32> to vector<16x128xf32>
    %116 = arith.addf %111, %115 : vector<16x128xf32>
    %cst_40 = arith.constant 0.000000e+00 : f32
    %117 = vector.broadcast %cst_40 : f32 to vector<16x128xf32>
    %118 = arith.maximumf %116, %117 : vector<16x128xf32>
    %119 = arith.truncf %118 : vector<16x128xf32> to vector<16x128xbf16>
    %c0_41 = arith.constant 0 : index
    %c0_42 = arith.constant 0 : index
    %120 = vector.load %arg12[%c0_41, %c0_42] : memref<128x32xbf16, #tpu.memory_space<vmem>>, vector<128x32xbf16>
    %cst_43 = arith.constant dense<0.000000e+00> : vector<16x32xf32>
    %121 = tpu.matmul %119, %120, %cst_43 {dimension_numbers = #tpu.dot_dimension_numbers<[1], [0], [0], [1], [0, 0, 1, 1], [], []>} : vector<16x128xbf16>, vector<128x32xbf16>, vector<16x32xf32> -> vector<16x32xf32>
    %c0_44 = arith.constant 0 : index
    %c0_45 = arith.constant 0 : index
    %122 = vector.load %arg13[%c0_44, %c0_45] : memref<1x32xf32, #tpu.memory_space<vmem>>, vector<1x32xf32>
    %123 = vector.shape_cast %122 : vector<1x32xf32> to vector<32xf32>
    %124 = vector.shape_cast %123 : vector<32xf32> to vector<1x32xf32>
    %125 = vector.broadcast %124 : vector<1x32xf32> to vector<16x32xf32>
    %126 = arith.addf %121, %125 : vector<16x32xf32>
    %127 = arith.addf %80, %126 : vector<16x32xf32>
    %128 = vector.shape_cast %127 : vector<16x32xf32> to vector<2x8x32xf32>
    %c0_46 = arith.constant 0 : index
    %c0_47 = arith.constant 0 : index
    %c0_48 = arith.constant 0 : index
    %129 = vector.load %arg14[%c0_46, %c0_47, %c0_48] : memref<2x8x32xf32, #tpu.memory_space<vmem>>, vector<2x8x32xf32>
    tpu.vector_store %arg14[%c0_46, %c0_47, %c0_48], %128 {strides = array<i32>} : memref<2x8x32xf32, #tpu.memory_space<vmem>>, vector<2x8x32xf32>,
    return
  }
  func.func @transform_0(%arg0: i32) -> (i32, i32, i32) {
    %c0_i32 = arith.constant 0 : i32
    %c0_i32_0 = arith.constant 0 : i32
    %c0_i32_1 = arith.constant 0 : i32
    return %arg0, %c0_i32, %c0_i32_0 : i32, i32, i32
  }
  func.func @transform_1(%arg0: i32) -> (i32, i32) {
    %c0_i32 = arith.constant 0 : i32
    %c0_i32_0 = arith.constant 0 : i32
    %c0_i32_1 = arith.constant 0 : i32
    return %c0_i32, %c0_i32_0 : i32, i32
  }
  func.func @transform_2(%arg0: i32) -> (i32, i32) {
    %c0_i32 = arith.constant 0 : i32
    %c0_i32_0 = arith.constant 0 : i32
    %c0_i32_1 = arith.constant 0 : i32
    return %c0_i32, %c0_i32_0 : i32, i32
  }
  func.func @transform_3(%arg0: i32) -> (i32, i32) {
    %c0_i32 = arith.constant 0 : i32
    %c0_i32_0 = arith.constant 0 : i32
    %c0_i32_1 = arith.constant 0 : i32
    return %c0_i32, %c0_i32_0 : i32, i32
  }
  func.func @transform_4(%arg0: i32) -> (i32, i32) {
    %c0_i32 = arith.constant 0 : i32
    %c0_i32_0 = arith.constant 0 : i32
    %c0_i32_1 = arith.constant 0 : i32
    return %c0_i32, %c0_i32_0 : i32, i32
  }
  func.func @transform_5(%arg0: i32) -> (i32, i32, i32) {
    %c0_i32 = arith.constant 0 : i32
    %c0_i32_0 = arith.constant 0 : i32
    %c0_i32_1 = arith.constant 0 : i32
    %c0_i32_2 = arith.constant 0 : i32
    return %c0_i32, %c0_i32_0, %c0_i32_1 : i32, i32, i32
  }
  func.func @transform_6(%arg0: i32) -> (i32, i32) {
    %c0_i32 = arith.constant 0 : i32
    %c0_i32_0 = arith.constant 0 : i32
    %c0_i32_1 = arith.constant 0 : i32
    return %c0_i32, %c0_i32_0 : i32, i32
  }
  func.func @transform_7(%arg0: i32) -> (i32, i32) {
    %c0_i32 = arith.constant 0 : i32
    %c0_i32_0 = arith.constant 0 : i32
    %c0_i32_1 = arith.constant 0 : i32
    return %c0_i32, %c0_i32_0 : i32, i32
  }
  func.func @transform_8(%arg0: i32) -> (i32, i32) {
    %c0_i32 = arith.constant 0 : i32
    %c0_i32_0 = arith.constant 0 : i32
    %c0_i32_1 = arith.constant 0 : i32
    return %c0_i32, %c0_i32_0 : i32, i32
  }
  func.func @transform_9(%arg0: i32) -> (i32, i32) {
    %c0_i32 = arith.constant 0 : i32
    %c0_i32_0 = arith.constant 0 : i32
    %c0_i32_1 = arith.constant 0 : i32
    return %c0_i32, %c0_i32_0 : i32, i32
  }
  func.func @transform_10(%arg0: i32) -> (i32, i32) {
    %c0_i32 = arith.constant 0 : i32
    %c0_i32_0 = arith.constant 0 : i32
    %c0_i32_1 = arith.constant 0 : i32
    return %c0_i32, %c0_i32_0 : i32, i32
  }
  func.func @transform_11(%arg0: i32) -> (i32, i32) {
    %c0_i32 = arith.constant 0 : i32
    %c0_i32_0 = arith.constant 0 : i32
    %c0_i32_1 = arith.constant 0 : i32
    return %c0_i32, %c0_i32_0 : i32, i32
  }
  func.func @transform_12(%arg0: i32) -> (i32, i32) {
    %c0_i32 = arith.constant 0 : i32
    %c0_i32_0 = arith.constant 0 : i32
    %c0_i32_1 = arith.constant 0 : i32
    return %c0_i32, %c0_i32_0 : i32, i32
  }
  func.func @transform_13(%arg0: i32) -> (i32, i32, i32) {
    %c0_i32 = arith.constant 0 : i32
    %c0_i32_0 = arith.constant 0 : i32
    %c0_i32_1 = arith.constant 0 : i32
    return %arg0, %c0_i32, %c0_i32_0 : i32, i32, i32
  }
}

</mosaic_0001>

<llo_original>
// kernel: tpu_custom_call.1
$region0: #{tpu_custom_call.1}
  #allocation0 [shape = 'u32[]', space=smem, size = 0x4, offset = 0x4, fixed_abs, tag = 'smem constant byte address 0x4 - core index']
  #allocation1 [shape = 'u32[144,128]{1,0:T(1,128)}', space=vmem, size = 0x12000, scoped, tag = 'internal scratch']
  %s0 = inlined_call_operand.vmem [shape: f32[2,8,32], index: 0, kind: input, shape index: {}]
  %s1 = inlined_call_operand.vmem [shape: f32[1,32], index: 1, kind: input, shape index: {}]
  %s2 = inlined_call_operand.vmem [shape: f32[1,32], index: 2, kind: input, shape index: {}]
  %s3 = inlined_call_operand.vmem [shape: bf16[32,96], index: 3, kind: input, shape index: {}]
  %s4 = inlined_call_operand.vmem [shape: f32[1,96], index: 4, kind: input, shape index: {}]
  %s5 = inlined_call_operand.vmem [shape: bf16[4,8,32], index: 5, kind: input, shape index: {}]
  %s6 = inlined_call_operand.vmem [shape: f32[1,32], index: 6, kind: input, shape index: {}]
  %s7 = inlined_call_operand.vmem [shape: f32[1,32], index: 7, kind: input, shape index: {}]
  %s8 = inlined_call_operand.vmem [shape: f32[1,32], index: 8, kind: input, shape index: {}]
  %s9 = inlined_call_operand.vmem [shape: bf16[32,128], index: 9, kind: input, shape index: {}]
  %s10 = inlined_call_operand.vmem [shape: f32[1,128], index: 10, kind: input, shape index: {}]
  %s11 = inlined_call_operand.vmem [shape: bf16[128,32], index: 11, kind: input, shape index: {}]
  %s12 = inlined_call_operand.vmem [shape: f32[1,32], index: 12, kind: input, shape index: {}]
  %s13 = inlined_call_operand.hbm [shape: f32[2,8,32], index: 13, kind: output, shape index: {}]
  %s14 = sld [smem:[#allocation0]]
  $region62: #{tpu_custom_call.1} parent=0
    _
  %s16 = ssub.s32 1, %s14
  %s17 = scalar_select 0, %s16, %s14
  $region1: #{tpu_custom_call.1} parent=0
    #allocation2 [shape = 'u8[8192]{0}', space=vmem, size = 0x2000, scoped, tag = 'output window, operand 0, single buffered']
    #allocation3 [shape = 's32[1]{0}', space=sflag, size = 0x4, scoped, tag = 'scoped memory for tpu_custom_call.1']
    %18 = vsyncpa [#allocation3], 0
    // Predicated region
    $region2: #{tpu_custom_call.1} parent=1 // pred_check
      _
    $region3: #{tpu_custom_call.1} parent=1 // pred_check_branch
      %20 = sbr.rel (0) target = $region5
    $region4: #{tpu_custom_call.1} parent=1 // pred_region
      _
    $region5: #{tpu_custom_call.1} parent=1 // pred_fallthru
      _
    // Predicated region
    $region6: #{tpu_custom_call.1} parent=1 // pred_check
      _
    $region7: #{tpu_custom_call.1} parent=1 // pred_check_branch
      %22 = sbr.rel (0) target = $region9
    $region8: #{tpu_custom_call.1} parent=1 // pred_region
      _
    $region9: #{tpu_custom_call.1} parent=1 // pred_fallthru
      _
    // Predicated region
    $region10: #{tpu_custom_call.1} parent=1 // pred_check
      _
    $region11: #{tpu_custom_call.1} parent=1 // pred_check_branch
      %24 = sbr.rel (0) target = $region13
    $region12: #{tpu_custom_call.1} parent=1 // pred_region
      _
    $region13: #{tpu_custom_call.1} parent=1 // pred_fallthru
      _
    // Predicated region
    $region14: #{tpu_custom_call.1} parent=1 // pred_check
      _
    $region15: #{tpu_custom_call.1} parent=1 // pred_check_branch
      %26 = sbr.rel (0) target = $region17
    $region16: #{tpu_custom_call.1} parent=1 // pred_region
      _
    $region17: #{tpu_custom_call.1} parent=1 // pred_fallthru
      _
    // Predicated region
    $region18: #{tpu_custom_call.1} parent=1 // pred_check
      _
    $region19: #{tpu_custom_call.1} parent=1 // pred_check_branch
      %28 = sbr.rel (0) target = $region21
    $region20: #{tpu_custom_call.1} parent=1 // pred_region
      _
    $region21: #{tpu_custom_call.1} parent=1 // pred_fallthru
      _
    // Predicated region
    $region22: #{tpu_custom_call.1} parent=1 // pred_check
      _
    $region23: #{tpu_custom_call.1} parent=1 // pred_check_branch
      %30 = sbr.rel (0) target = $region25
    $region24: #{tpu_custom_call.1} parent=1 // pred_region
      _
    $region25: #{tpu_custom_call.1} parent=1 // pred_fallthru
      _
    // Predicated region
    $region26: #{tpu_custom_call.1} parent=1 // pred_check
      _
    $region27: #{tpu_custom_call.1} parent=1 // pred_check_branch
      %32 = sbr.rel (0) target = $region29
    $region28: #{tpu_custom_call.1} parent=1 // pred_region
      _
    $region29: #{tpu_custom_call.1} parent=1 // pred_fallthru
      _
    // Predicated region
    $region30: #{tpu_custom_call.1} parent=1 // pred_check
      _
    $region31: #{tpu_custom_call.1} parent=1 // pred_check_branch
      %34 = sbr.rel (0) target = $region33
    $region32: #{tpu_custom_call.1} parent=1 // pred_region
      _
    $region33: #{tpu_custom_call.1} parent=1 // pred_fallthru
      _
    // Predicated region
    $region34: #{tpu_custom_call.1} parent=1 // pred_check
      _
    $region35: #{tpu_custom_call.1} parent=1 // pred_check_branch
      %36 = sbr.rel (0) target = $region37
    $region36: #{tpu_custom_call.1} parent=1 // pred_region
      _
    $region37: #{tpu_custom_call.1} parent=1 // pred_fallthru
      _
    // Predicated region
    $region38: #{tpu_custom_call.1} parent=1 // pred_check
      _
    $region39: #{tpu_custom_call.1} parent=1 // pred_check_branch
      %38 = sbr.rel (0) target = $region41
    $region40: #{tpu_custom_call.1} parent=1 // pred_region
      _
    $region41: #{tpu_custom_call.1} parent=1 // pred_fallthru
      _
    // Predicated region
    $region42: #{tpu_custom_call.1} parent=1 // pred_check
      _
    $region43: #{tpu_custom_call.1} parent=1 // pred_check_branch
      %40 = sbr.rel (0) target = $region45
    $region44: #{tpu_custom_call.1} parent=1 // pred_region
      _
    $region45: #{tpu_custom_call.1} parent=1 // pred_fallthru
      _
    // Predicated region
    $region46: #{tpu_custom_call.1} parent=1 // pred_check
      _
    $region47: #{tpu_custom_call.1} parent=1 // pred_check_branch
      %42 = sbr.rel (0) target = $region49
    $region48: #{tpu_custom_call.1} parent=1 // pred_region
      _
    $region49: #{tpu_custom_call.1} parent=1 // pred_fallthru
      _
    // Predicated region
    $region50: #{tpu_custom_call.1} parent=1 // pred_check
      _
    $region51: #{tpu_custom_call.1} parent=1 // pred_check_branch
      %44 = sbr.rel (0) target = $region53
    $region52: #{tpu_custom_call.1} parent=1 // pred_region
      _
    $region53: #{tpu_custom_call.1} parent=1 // pred_fallthru
      _
    %v46 = vld [vmem:[%s0] sm:$0xff]
    %v47 = vld [vmem:[%s0 + $0x8] sm:$0xff]
    %v48 = vld [vmem:[%s1] sm:$0x1]
    %v49 = vld [vmem:[%s2] sm:$0x1]
    %vm50 = vcmask 261120
    %v51 = vsel %vm50, %v46, 0.0
    %52 = vadd.xlane.f32.xlu0 %v51
    %v53 = vpop.xlane.xlu0 %52
    %v54 = vsel %vm50, %v47, 0.0
    %55 = vadd.xlane.f32.xlu0 %v54
    %v56 = vpop.xlane.xlu0 %55
    %v57 = vrcp.pop 32.0
    %v58 = vmul.f32 %v53, %v57
    %v59 = vmul.f32 %v56, %v57
    %v60 = vsub.f32 %v46, %v58
    %v61 = vsub.f32 %v47, %v59
    %v62 = vmul.f32 %v60, %v60
    %v63 = vmul.f32 %v61, %v61
    %v64 = vsel %vm50, %v62, 0.0
    %65 = vadd.xlane.f32.xlu0 %v64
    %v66 = vpop.xlane.xlu0 %65
    %v67 = vsel %vm50, %v63, 0.0
    %68 = vadd.xlane.f32.xlu0 %v67
    %v69 = vpop.xlane.xlu0 %68
    %v70 = vmul.f32 %v66, %v57
    %v71 = vmul.f32 %v69, %v57
    %v72 = vadd.f32 %v70, 1e-05
    %v73 = vadd.f32 %v71, 1e-05
    %v74 = vrsqrt.pop %v72
    %v75 = vrsqrt.pop %v73
    %v76 = vmul.f32 %v60, %v74
    %v77 = vmul.f32 %v61, %v75
    %v79 = vlaneseq
    %v80 = vshrl.u32 %v79, 7
    %v81 = vsub.s32 0, %v80
    %v82 = vrot.slane %v48, %v81
    %v84 = vmul.f32 %v76, %v82
    %v85 = vmul.f32 %v77, %v82
    %v87 = vlaneseq
    %v88 = vshrl.u32 %v87, 7
    %v89 = vsub.s32 0, %v88
    %v90 = vrot.slane %v49, %v89
    %v92 = vadd.f32 %v84, %v90
    %v93 = vadd.f32 %v85, %v90
    %v94 = vpack.c.bf16 %v93, %v92
    %v95 = vld [vmem:[%s3] sm:$0xf]
    %v96 = vld [vmem:[%s3 + $0x4] sm:$0xf]
    %v97 = vld [vmem:[%s3 + $0x8] sm:$0xf]
    %v98 = vld [vmem:[%s3 + $0xc] sm:$0xf]
    %v99 = vld [vmem:[%s4] sm:$0x1]
    %v101 = vlaneseq
    %v102 = vshrl.u32 %v101, 7
    %v103 = vsub.s32 0, %v102
    %v104 = vrot.slane %v99, %v103
    %v110 = vunpack.c.l.b16 %v95
    %v111 = vunpack.c.l.b16 %v96
    %v112 = vunpack.c.l.b16 %v97
    %v113 = vunpack.c.l.b16 %v98
    %v114 = vpack.c.b16 %v111, %v110
    %v115 = vpack.c.b16 %v113, %v112
    %v119 = vsel %vm50, %v94, 0
    %121 = vmatprep.subr.bf16.mxu0 0
    %122 = vmatpush1.bf16.msra.mxu0 %v114
    %123 = vmatprep.subr.bf16.mxu0 0
    %124 = vmatpush1.bf16.msra.mxu0 %v115
    %125 = vmatprep.subr.bf16.mxu0 0
    %126 = vmatpush1.bf16.msra.mxu0 0
    %127 = vmatprep.subr.bf16.mxu0 0
    %128 = vmatpush1.bf16.msra.mxu0 0
    %129 = vmatprep.subr.bf16.mxu0 0
    %130 = vmatpush1.bf16.msra.mxu0 0
    %131 = vmatprep.subr.bf16.mxu0 0
    %132 = vmatpush1.bf16.msra.mxu0 0
    %133 = vmatprep.subr.bf16.mxu0 0
    %134 = vmatpush1.bf16.msra.mxu0 0
    %135 = vmatprep.subr.bf16.mxu0 0
    %136 = vmatpush1.bf16.msra.mxu0 0
    %137 = vmatprep.subr.bf16.mxu0 0
    %138 = vmatpush1.bf16.msra.mxu0 0
    %139 = vmatprep.subr.bf16.mxu0 0
    %140 = vmatpush1.bf16.msra.mxu0 0
    %141 = vmatprep.subr.bf16.mxu0 0
    %142 = vmatpush1.bf16.msra.mxu0 0
    %143 = vmatprep.subr.bf16.mxu0 0
    %144 = vmatpush1.bf16.msra.mxu0 0
    %145 = vmatprep.subr.bf16.mxu0 0
    %146 = vmatpush1.bf16.msra.mxu0 0
    %147 = vmatprep.subr.bf16.mxu0 0
    %148 = vmatpush1.bf16.msra.mxu0 0
    %149 = vmatprep.subr.bf16.mxu0 0
    %150 = vmatpush1.bf16.msra.mxu0 0
    %151 = vmatprep.subr.bf16.mxu0 0
    %152 = vmatpush1.bf16.msra.mxu0 0
    %153 = vmatprep.mubr.bf16.mxu0 0
    %154 = vmatmul.mubr.bf16.gmra.mrb[0].mxu0 %v119
    %v155 = vpop.f32.mrb[0].mxu0
    %v156 = vadd.f32 %v104, %v155
    %v157 = vpop.f32.mrb[0].mxu0
    %v158 = vpop.f32.mrb[0].mxu0
    %v159 = vadd.f32 %v104, %v158
    %v160 = vpop.f32.mrb[0].mxu0
    %161 = vdwg.mxu0
    %164 = vrot.lane.b32.xlu0 %v156, 120
    %v165 = vpop.permute.xlu0 %164
    %166 = vrot.lane.b32.xlu0 %v159, 120
    %v167 = vpop.permute.xlu0 %166
    %170 = vrot.lane.b32.xlu0 %v156, 112
    %v171 = vpop.permute.xlu0 %170
    %172 = vrot.lane.b32.xlu0 %v159, 112
    %v173 = vpop.permute.xlu0 %172
    %176 = vrot.lane.b32.xlu0 %v156, 104
    %v177 = vpop.permute.xlu0 %176
    %178 = vrot.lane.b32.xlu0 %v159, 104
    %v179 = vpop.permute.xlu0 %178
    %v182 = vpack.c.bf16 %v156, %v156
    %v183 = vpack.c.bf16 %v159, %v159
    %v184 = vpack.c.bf16 %v165, %v165
    %v185 = vpack.c.bf16 %v167, %v167
    %v186 = vpack.c.bf16 %v171, %v171
    %v187 = vpack.c.bf16 %v173, %v173
    %v188 = vpack.c.bf16 %v177, %v177
    %v189 = vpack.c.bf16 %v179, %v179
    %191 = vrot.lane.b32.xlu0 %v182, 96
    %v192 = vpop.permute.xlu0 %191
    %vm193 = vcmask 64512
    %v195 = vsel %vm193, %v182, 0
    %v198 = vsel %vm193, %v192, 0
    %200 = vmatprep.subr.bf16.mxu0 0
    %201 = vmatpush1.bf16.xpose.msra.mxu0 %v198
    %202 = vmatprep.subr.bf16.mxu0 0
    %203 = vmatpush1.bf16.xpose.msra.mxu0 0
    %204 = vmatprep.subr.bf16.mxu0 0
    %205 = vmatpush1.bf16.xpose.msra.mxu0 0
    %206 = vmatprep.subr.bf16.mxu0 0
    %207 = vmatpush1.bf16.xpose.msra.mxu0 0
    %208 = vmatprep.subr.bf16.mxu0 0
    %209 = vmatpush1.bf16.xpose.msra.mxu0 0
    %210 = vmatprep.subr.bf16.mxu0 0
    %211 = vmatpush1.bf16.xpose.msra.mxu0 0
    %212 = vmatprep.subr.bf16.mxu0 0
    %213 = vmatpush1.bf16.xpose.msra.mxu0 0
    %214 = vmatprep.subr.bf16.mxu0 0
    %215 = vmatpush1.bf16.xpose.msra.mxu0 0
    %216 = vmatprep.subr.bf16.mxu0 0
    %217 = vmatpush1.bf16.xpose.msra.mxu0 0
    %218 = vmatprep.subr.bf16.mxu0 0
    %219 = vmatpush1.bf16.xpose.msra.mxu0 0
    %220 = vmatprep.subr.bf16.mxu0 0
    %221 = vmatpush1.bf16.xpose.msra.mxu0 0
    %222 = vmatprep.subr.bf16.mxu0 0
    %223 = vmatpush1.bf16.xpose.msra.mxu0 0
    %224 = vmatprep.subr.bf16.mxu0 0
    %225 = vmatpush1.bf16.xpose.msra.mxu0 0
    %226 = vmatprep.subr.bf16.mxu0 0
    %227 = vmatpush1.bf16.xpose.msra.mxu0 0
    %228 = vmatprep.subr.bf16.mxu0 0
    %229 = vmatpush1.bf16.xpose.msra.mxu0 0
    %230 = vmatprep.subr.bf16.mxu0 0
    %231 = vmatpush1.bf16.xpose.msra.mxu0 0
    %232 = vmatprep.mubr.bf16.mxu0 0
    %233 = vmatmul.mubr.bf16.gmra.mrb[0].mxu0 %v195
    %v234 = vpop.f32.mrb[0].mxu0
    %v235 = vadd.f32 0.0, %v234
    %v236 = vpop.f32.mrb[0].mxu0
    %v237 = vpop.f32.mrb[0].mxu0
    %v238 = vpop.f32.mrb[0].mxu0
    %239 = vdwg.mxu0
    %241 = vrot.lane.b32.xlu0 %v183, 96
    %v242 = vpop.permute.xlu0 %241
    %v244 = vsel %vm193, %v183, 0
    %v247 = vsel %vm193, %v242, 0
    %249 = vmatprep.subr.bf16.mxu0 0
    %250 = vmatpush1.bf16.xpose.msra.mxu0 %v247
    %251 = vmatprep.subr.bf16.mxu0 0
    %252 = vmatpush1.bf16.xpose.msra.mxu0 0
    %253 = vmatprep.subr.bf16.mxu0 0
    %254 = vmatpush1.bf16.xpose.msra.mxu0 0
    %255 = vmatprep.subr.bf16.mxu0 0
    %256 = vmatpush1.bf16.xpose.msra.mxu0 0
    %257 = vmatprep.subr.bf16.mxu0 0
    %258 = vmatpush1.bf16.xpose.msra.mxu0 0
    %259 = vmatprep.subr.bf16.mxu0 0
    %260 = vmatpush1.bf16.xpose.msra.mxu0 0
    %261 = vmatprep.subr.bf16.mxu0 0
    %262 = vmatpush1.bf16.xpose.msra.mxu0 0
    %263 = vmatprep.subr.bf16.mxu0 0
    %264 = vmatpush1.bf16.xpose.msra.mxu0 0
    %265 = vmatprep.subr.bf16.mxu0 0
    %266 = vmatpush1.bf16.xpose.msra.mxu0 0
    %267 = vmatprep.subr.bf16.mxu0 0
    %268 = vmatpush1.bf16.xpose.msra.mxu0 0
    %269 = vmatprep.subr.bf16.mxu0 0
    %270 = vmatpush1.bf16.xpose.msra.mxu0 0
    %271 = vmatprep.subr.bf16.mxu0 0
    %272 = vmatpush1.bf16.xpose.msra.mxu0 0
    %273 = vmatprep.subr.bf16.mxu0 0
    %274 = vmatpush1.bf16.xpose.msra.mxu0 0
    %275 = vmatprep.subr.bf16.mxu0 0
    %276 = vmatpush1.bf16.xpose.msra.mxu0 0
    %277 = vmatprep.subr.bf16.mxu0 0
    %278 = vmatpush1.bf16.xpose.msra.mxu0 0
    %279 = vmatprep.subr.bf16.mxu0 0
    %280 = vmatpush1.bf16.xpose.msra.mxu0 0
    %281 = vmatprep.mubr.bf16.mxu0 0
    %282 = vmatmul.mubr.bf16.gmra.mrb[0].mxu0 %v244
    %v283 = vpop.f32.mrb[0].mxu0
    %v284 = vadd.f32 0.0, %v283
    %v285 = vpop.f32.mrb[0].mxu0
    %v286 = vpop.f32.mrb[0].mxu0
    %v287 = vpop.f32.mrb[0].mxu0
    %288 = vdwg.mxu0
    %290 = vrot.lane.b32.xlu0 %v184, 96
    %v291 = vpop.permute.xlu0 %290
    %v293 = vsel %vm193, %v184, 0
    %v296 = vsel %vm193, %v291, 0
    %298 = vmatprep.subr.bf16.mxu0 0
    %299 = vmatpush1.bf16.xpose.msra.mxu0 %v296
    %300 = vmatprep.subr.bf16.mxu0 0
    %301 = vmatpush1.bf16.xpose.msra.mxu0 0
    %302 = vmatprep.subr.bf16.mxu0 0
    %303 = vmatpush1.bf16.xpose.msra.mxu0 0
    %304 = vmatprep.subr.bf16.mxu0 0
    %305 = vmatpush1.bf16.xpose.msra.mxu0 0
    %306 = vmatprep.subr.bf16.mxu0 0
    %307 = vmatpush1.bf16.xpose.msra.mxu0 0
    %308 = vmatprep.subr.bf16.mxu0 0
    %309 = vmatpush1.bf16.xpose.msra.mxu0 0
    %310 = vmatprep.subr.bf16.mxu0 0
    %311 = vmatpush1.bf16.xpose.msra.mxu0 0
    %312 = vmatprep.subr.bf16.mxu0 0
    %313 = vmatpush1.bf16.xpose.msra.mxu0 0
    %314 = vmatprep.subr.bf16.mxu0 0
    %315 = vmatpush1.bf16.xpose.msra.mxu0 0
    %316 = vmatprep.subr.bf16.mxu0 0
    %317 = vmatpush1.bf16.xpose.msra.mxu0 0
    %318 = vmatprep.subr.bf16.mxu0 0
    %319 = vmatpush1.bf16.xpose.msra.mxu0 0
    %320 = vmatprep.subr.bf16.mxu0 0
    %321 = vmatpush1.bf16.xpose.msra.mxu0 0
    %322 = vmatprep.subr.bf16.mxu0 0
    %323 = vmatpush1.bf16.xpose.msra.mxu0 0
    %324 = vmatprep.subr.bf16.mxu0 0
    %325 = vmatpush1.bf16.xpose.msra.mxu0 0
    %326 = vmatprep.subr.bf16.mxu0 0
    %327 = vmatpush1.bf16.xpose.msra.mxu0 0
    %328 = vmatprep.subr.bf16.mxu0 0
    %329 = vmatpush1.bf16.xpose.msra.mxu0 0
    %330 = vmatprep.mubr.bf16.mxu0 0
    %331 = vmatmul.mubr.bf16.gmra.mrb[0].mxu0 %v293
    %v332 = vpop.f32.mrb[0].mxu0
    %v333 = vadd.f32 0.0, %v332
    %v334 = vpop.f32.mrb[0].mxu0
    %v335 = vpop.f32.mrb[0].mxu0
    %v336 = vpop.f32.mrb[0].mxu0
    %337 = vdwg.mxu0
    %339 = vrot.lane.b32.xlu0 %v185, 96
    %v340 = vpop.permute.xlu0 %339
    %v342 = vsel %vm193, %v185, 0
    %v345 = vsel %vm193, %v340, 0
    %347 = vmatprep.subr.bf16.mxu0 0
    %348 = vmatpush1.bf16.xpose.msra.mxu0 %v345
    %349 = vmatprep.subr.bf16.mxu0 0
    %350 = vmatpush1.bf16.xpose.msra.mxu0 0
    %351 = vmatprep.subr.bf16.mxu0 0
    %352 = vmatpush1.bf16.xpose.msra.mxu0 0
    %353 = vmatprep.subr.bf16.mxu0 0
    %354 = vmatpush1.bf16.xpose.msra.mxu0 0
    %355 = vmatprep.subr.bf16.mxu0 0
    %356 = vmatpush1.bf16.xpose.msra.mxu0 0
    %357 = vmatprep.subr.bf16.mxu0 0
    %358 = vmatpush1.bf16.xpose.msra.mxu0 0
    %359 = vmatprep.subr.bf16.mxu0 0
    %360 = vmatpush1.bf16.xpose.msra.mxu0 0
    %361 = vmatprep.subr.bf16.mxu0 0
    %362 = vmatpush1.bf16.xpose.msra.mxu0 0
    %363 = vmatprep.subr.bf16.mxu0 0
    %364 = vmatpush1.bf16.xpose.msra.mxu0 0
    %365 = vmatprep.subr.bf16.mxu0 0
    %366 = vmatpush1.bf16.xpose.msra.mxu0 0
    %367 = vmatprep.subr.bf16.mxu0 0
    %368 = vmatpush1.bf16.xpose.msra.mxu0 0
    %369 = vmatprep.subr.bf16.mxu0 0
    %370 = vmatpush1.bf16.xpose.msra.mxu0 0
    %371 = vmatprep.subr.bf16.mxu0 0
    %372 = vmatpush1.bf16.xpose.msra.mxu0 0
    %373 = vmatprep.subr.bf16.mxu0 0
    %374 = vmatpush1.bf16.xpose.msra.mxu0 0
    %375 = vmatprep.subr.bf16.mxu0 0
    %376 = vmatpush1.bf16.xpose.msra.mxu0 0
    %377 = vmatprep.subr.bf16.mxu0 0
    %378 = vmatpush1.bf16.xpose.msra.mxu0 0
    %379 = vmatprep.mubr.bf16.mxu0 0
    %380 = vmatmul.mubr.bf16.gmra.mrb[0].mxu0 %v342
    %v381 = vpop.f32.mrb[0].mxu0
    %v382 = vadd.f32 0.0, %v381
    %v383 = vpop.f32.mrb[0].mxu0
    %v384 = vpop.f32.mrb[0].mxu0
    %v385 = vpop.f32.mrb[0].mxu0
    %386 = vdwg.mxu0
    %388 = vrot.lane.b32.xlu0 %v186, 96
    %v389 = vpop.permute.xlu0 %388
    %v391 = vsel %vm193, %v186, 0
    %v394 = vsel %vm193, %v389, 0
    %396 = vmatprep.subr.bf16.mxu0 0
    %397 = vmatpush1.bf16.xpose.msra.mxu0 %v394
    %398 = vmatprep.subr.bf16.mxu0 0
    %399 = vmatpush1.bf16.xpose.msra.mxu0 0
    %400 = vmatprep.subr.bf16.mxu0 0
    %401 = vmatpush1.bf16.xpose.msra.mxu0 0
    %402 = vmatprep.subr.bf16.mxu0 0
    %403 = vmatpush1.bf16.xpose.msra.mxu0 0
    %404 = vmatprep.subr.bf16.mxu0 0
    %405 = vmatpush1.bf16.xpose.msra.mxu0 0
    %406 = vmatprep.subr.bf16.mxu0 0
    %407 = vmatpush1.bf16.xpose.msra.mxu0 0
    %408 = vmatprep.subr.bf16.mxu0 0
    %409 = vmatpush1.bf16.xpose.msra.mxu0 0
    %410 = vmatprep.subr.bf16.mxu0 0
    %411 = vmatpush1.bf16.xpose.msra.mxu0 0
    %412 = vmatprep.subr.bf16.mxu0 0
    %413 = vmatpush1.bf16.xpose.msra.mxu0 0
    %414 = vmatprep.subr.bf16.mxu0 0
    %415 = vmatpush1.bf16.xpose.msra.mxu0 0
    %416 = vmatprep.subr.bf16.mxu0 0
    %417 = vmatpush1.bf16.xpose.msra.mxu0 0
    %418 = vmatprep.subr.bf16.mxu0 0
    %419 = vmatpush1.bf16.xpose.msra.mxu0 0
    %420 = vmatprep.subr.bf16.mxu0 0
    %421 = vmatpush1.bf16.xpose.msra.mxu0 0
    %422 = vmatprep.subr.bf16.mxu0 0
    %423 = vmatpush1.bf16.xpose.msra.mxu0 0
    %424 = vmatprep.subr.bf16.mxu0 0
    %425 = vmatpush1.bf16.xpose.msra.mxu0 0
    %426 = vmatprep.subr.bf16.mxu0 0
    %427 = vmatpush1.bf16.xpose.msra.mxu0 0
    %428 = vmatprep.mubr.bf16.mxu0 0
    %429 = vmatmul.mubr.bf16.gmra.mrb[0].mxu0 %v391
    %v430 = vpop.f32.mrb[0].mxu0
    %v431 = vadd.f32 0.0, %v430
    %v432 = vpop.f32.mrb[0].mxu0
    %v433 = vpop.f32.mrb[0].mxu0
    %v434 = vpop.f32.mrb[0].mxu0
    %435 = vdwg.mxu0
    %437 = vrot.lane.b32.xlu0 %v187, 96
    %v438 = vpop.permute.xlu0 %437
    %v440 = vsel %vm193, %v187, 0
    %v443 = vsel %vm193, %v438, 0
    %445 = vmatprep.subr.bf16.mxu0 0
    %446 = vmatpush1.bf16.xpose.msra.mxu0 %v443
    %447 = vmatprep.subr.bf16.mxu0 0
    %448 = vmatpush1.bf16.xpose.msra.mxu0 0
    %449 = vmatprep.subr.bf16.mxu0 0
    %450 = vmatpush1.bf16.xpose.msra.mxu0 0
    %451 = vmatprep.subr.bf16.mxu0 0
    %452 = vmatpush1.bf16.xpose.msra.mxu0 0
    %453 = vmatprep.subr.bf16.mxu0 0
    %454 = vmatpush1.bf16.xpose.msra.mxu0 0
    %455 = vmatprep.subr.bf16.mxu0 0
    %456 = vmatpush1.bf16.xpose.msra.mxu0 0
    %457 = vmatprep.subr.bf16.mxu0 0
    %458 = vmatpush1.bf16.xpose.msra.mxu0 0
    %459 = vmatprep.subr.bf16.mxu0 0
    %460 = vmatpush1.bf16.xpose.msra.mxu0 0
    %461 = vmatprep.subr.bf16.mxu0 0
    %462 = vmatpush1.bf16.xpose.msra.mxu0 0
    %463 = vmatprep.subr.bf16.mxu0 0
    %464 = vmatpush1.bf16.xpose.msra.mxu0 0
    %465 = vmatprep.subr.bf16.mxu0 0
    %466 = vmatpush1.bf16.xpose.msra.mxu0 0
    %467 = vmatprep.subr.bf16.mxu0 0
    %468 = vmatpush1.bf16.xpose.msra.mxu0 0
    %469 = vmatprep.subr.bf16.mxu0 0
    %470 = vmatpush1.bf16.xpose.msra.mxu0 0
    %471 = vmatprep.subr.bf16.mxu0 0
    %472 = vmatpush1.bf16.xpose.msra.mxu0 0
    %473 = vmatprep.subr.bf16.mxu0 0
    %474 = vmatpush1.bf16.xpose.msra.mxu0 0
    %475 = vmatprep.subr.bf16.mxu0 0
    %476 = vmatpush1.bf16.xpose.msra.mxu0 0
    %477 = vmatprep.mubr.bf16.mxu0 0
    %478 = vmatmul.mubr.bf16.gmra.mrb[0].mxu0 %v440
    %v479 = vpop.f32.mrb[0].mxu0
    %v480 = vadd.f32 0.0, %v479
    %v481 = vpop.f32.mrb[0].mxu0
    %v482 = vpop.f32.mrb[0].mxu0
    %v483 = vpop.f32.mrb[0].mxu0
    %484 = vdwg.mxu0
    %486 = vrot.lane.b32.xlu0 %v188, 96
    %v487 = vpop.permute.xlu0 %486
    %v489 = vsel %vm193, %v188, 0
    %v492 = vsel %vm193, %v487, 0
    %494 = vmatprep.subr.bf16.mxu0 0
    %495 = vmatpush1.bf16.xpose.msra.mxu0 %v492
    %496 = vmatprep.subr.bf16.mxu0 0
    %497 = vmatpush1.bf16.xpose.msra.mxu0 0
    %498 = vmatprep.subr.bf16.mxu0 0
    %499 = vmatpush1.bf16.xpose.msra.mxu0 0
    %500 = vmatprep.subr.bf16.mxu0 0
    %501 = vmatpush1.bf16.xpose.msra.mxu0 0
    %502 = vmatprep.subr.bf16.mxu0 0
    %503 = vmatpush1.bf16.xpose.msra.mxu0 0
    %504 = vmatprep.subr.bf16.mxu0 0
    %505 = vmatpush1.bf16.xpose.msra.mxu0 0
    %506 = vmatprep.subr.bf16.mxu0 0
    %507 = vmatpush1.bf16.xpose.msra.mxu0 0
    %508 = vmatprep.subr.bf16.mxu0 0
    %509 = vmatpush1.bf16.xpose.msra.mxu0 0
    %510 = vmatprep.subr.bf16.mxu0 0
    %511 = vmatpush1.bf16.xpose.msra.mxu0 0
    %512 = vmatprep.subr.bf16.mxu0 0
    %513 = vmatpush1.bf16.xpose.msra.mxu0 0
    %514 = vmatprep.subr.bf16.mxu0 0
    %515 = vmatpush1.bf16.xpose.msra.mxu0 0
    %516 = vmatprep.subr.bf16.mxu0 0
    %517 = vmatpush1.bf16.xpose.msra.mxu0 0
    %518 = vmatprep.subr.bf16.mxu0 0
    %519 = vmatpush1.bf16.xpose.msra.mxu0 0
    %520 = vmatprep.subr.bf16.mxu0 0
    %521 = vmatpush1.bf16.xpose.msra.mxu0 0
    %522 = vmatprep.subr.bf16.mxu0 0
    %523 = vmatpush1.bf16.xpose.msra.mxu0 0
    %524 = vmatprep.subr.bf16.mxu0 0
    %525 = vmatpush1.bf16.xpose.msra.mxu0 0
    %526 = vmatprep.mubr.bf16.mxu0 0
    %527 = vmatmul.mubr.bf16.gmra.mrb[0].mxu0 %v489
    %v528 = vpop.f32.mrb[0].mxu0
    %v529 = vadd.f32 0.0, %v528
    %v530 = vpop.f32.mrb[0].mxu0
    %v531 = vpop.f32.mrb[0].mxu0
    %v532 = vpop.f32.mrb[0].mxu0
    %533 = vdwg.mxu0
    %535 = vrot.lane.b32.xlu0 %v189, 96
    %v536 = vpop.permute.xlu0 %535
    %v538 = vsel %vm193, %v189, 0
    %v541 = vsel %vm193, %v536, 0
    %543 = vmatprep.subr.bf16.mxu0 0
    %544 = vmatpush1.bf16.xpose.msra.mxu0 %v541
    %545 = vmatprep.subr.bf16.mxu0 0
    %546 = vmatpush1.bf16.xpose.msra.mxu0 0
    %547 = vmatprep.subr.bf16.mxu0 0
    %548 = vmatpush1.bf16.xpose.msra.mxu0 0
    %549 = vmatprep.subr.bf16.mxu0 0
    %550 = vmatpush1.bf16.xpose.msra.mxu0 0
    %551 = vmatprep.subr.bf16.mxu0 0
    %552 = vmatpush1.bf16.xpose.msra.mxu0 0
    %553 = vmatprep.subr.bf16.mxu0 0
    %554 = vmatpush1.bf16.xpose.msra.mxu0 0
    %555 = vmatprep.subr.bf16.mxu0 0
    %556 = vmatpush1.bf16.xpose.msra.mxu0 0
    %557 = vmatprep.subr.bf16.mxu0 0
    %558 = vmatpush1.bf16.xpose.msra.mxu0 0
    %559 = vmatprep.subr.bf16.mxu0 0
    %560 = vmatpush1.bf16.xpose.msra.mxu0 0
    %561 = vmatprep.subr.bf16.mxu0 0
    %562 = vmatpush1.bf16.xpose.msra.mxu0 0
    %563 = vmatprep.subr.bf16.mxu0 0
    %564 = vmatpush1.bf16.xpose.msra.mxu0 0
    %565 = vmatprep.subr.bf16.mxu0 0
    %566 = vmatpush1.bf16.xpose.msra.mxu0 0
    %567 = vmatprep.subr.bf16.mxu0 0
    %568 = vmatpush1.bf16.xpose.msra.mxu0 0
    %569 = vmatprep.subr.bf16.mxu0 0
    %570 = vmatpush1.bf16.xpose.msra.mxu0 0
    %571 = vmatprep.subr.bf16.mxu0 0
    %572 = vmatpush1.bf16.xpose.msra.mxu0 0
    %573 = vmatprep.subr.bf16.mxu0 0
    %574 = vmatpush1.bf16.xpose.msra.mxu0 0
    %575 = vmatprep.mubr.bf16.mxu0 0
    %576 = vmatmul.mubr.bf16.gmra.mrb[0].mxu0 %v538
    %v577 = vpop.f32.mrb[0].mxu0
    %v578 = vadd.f32 0.0, %v577
    %v579 = vpop.f32.mrb[0].mxu0
    %v580 = vpop.f32.mrb[0].mxu0
    %v581 = vpop.f32.mrb[0].mxu0
    %582 = vdwg.mxu0
    %v583 = vsel %vm193, %v235, -inf
    %584 = vmax.xlane.f32.xlu0 %v583
    %v585 = vpop.xlane.xlu0 %584
    %v586 = vsel %vm193, %v284, -inf
    %587 = vmax.xlane.f32.xlu0 %v586
    %v588 = vpop.xlane.xlu0 %587
    %v589 = vsel %vm193, %v333, -inf
    %590 = vmax.xlane.f32.xlu0 %v589
    %v591 = vpop.xlane.xlu0 %590
    %v592 = vsel %vm193, %v382, -inf
    %593 = vmax.xlane.f32.xlu0 %v592
    %v594 = vpop.xlane.xlu0 %593
    %v595 = vsel %vm193, %v431, -inf
    %596 = vmax.xlane.f32.xlu0 %v595
    %v597 = vpop.xlane.xlu0 %596
    %v598 = vsel %vm193, %v480, -inf
    %599 = vmax.xlane.f32.xlu0 %v598
    %v600 = vpop.xlane.xlu0 %599
    %v601 = vsel %vm193, %v529, -inf
    %602 = vmax.xlane.f32.xlu0 %v601
    %v603 = vpop.xlane.xlu0 %602
    %v604 = vsel %vm193, %v578, -inf
    %605 = vmax.xlane.f32.xlu0 %v604
    %v606 = vpop.xlane.xlu0 %605
    %v607 = vsub.f32 %v235, %v585
    %v608 = vsub.f32 %v284, %v588
    %v609 = vsub.f32 %v333, %v591
    %v610 = vsub.f32 %v382, %v594
    %v611 = vsub.f32 %v431, %v597
    %v612 = vsub.f32 %v480, %v600
    %v613 = vsub.f32 %v529, %v603
    %v614 = vsub.f32 %v578, %v606
    %v615 = vmul.f32 %v607, 1.442695
    %v616 = vpow.pop %v615
    %v617 = vmul.f32 %v608, 1.442695
    %v618 = vpow.pop %v617
    %v619 = vmul.f32 %v609, 1.442695
    %v620 = vpow.pop %v619
    %v621 = vmul.f32 %v610, 1.442695
    %v622 = vpow.pop %v621
    %v623 = vmul.f32 %v611, 1.442695
    %v624 = vpow.pop %v623
    %v625 = vmul.f32 %v612, 1.442695
    %v626 = vpow.pop %v625
    %v627 = vmul.f32 %v613, 1.442695
    %v628 = vpow.pop %v627
    %v629 = vmul.f32 %v614, 1.442695
    %v630 = vpow.pop %v629
    %v631 = vsel %vm193, %v616, 0.0
    %632 = vadd.xlane.f32.xlu0 %v631
    %v633 = vpop.xlane.xlu0 %632
    %v634 = vsel %vm193, %v618, 0.0
    %635 = vadd.xlane.f32.xlu0 %v634
    %v636 = vpop.xlane.xlu0 %635
    %v637 = vsel %vm193, %v620, 0.0
    %638 = vadd.xlane.f32.xlu0 %v637
    %v639 = vpop.xlane.xlu0 %638
    %v640 = vsel %vm193, %v622, 0.0
    %641 = vadd.xlane.f32.xlu0 %v640
    %v642 = vpop.xlane.xlu0 %641
    %v643 = vsel %vm193, %v624, 0.0
    %644 = vadd.xlane.f32.xlu0 %v643
    %v645 = vpop.xlane.xlu0 %644
    %v646 = vsel %vm193, %v626, 0.0
    %647 = vadd.xlane.f32.xlu0 %v646
    %v648 = vpop.xlane.xlu0 %647
    %v649 = vsel %vm193, %v628, 0.0
    %650 = vadd.xlane.f32.xlu0 %v649
    %v651 = vpop.xlane.xlu0 %650
    %v652 = vsel %vm193, %v630, 0.0
    %653 = vadd.xlane.f32.xlu0 %v652
    %v654 = vpop.xlane.xlu0 %653
    %v655 = vrcp.pop %v633
    %v656 = vrcp.pop %v636
    %v657 = vrcp.pop %v639
    %v658 = vrcp.pop %v642
    %v659 = vrcp.pop %v645
    %v660 = vrcp.pop %v648
    %v661 = vrcp.pop %v651
    %v662 = vrcp.pop %v654
    %v663 = vmul.f32 %v616, %v655
    %v664 = vmul.f32 %v618, %v656
    %v665 = vmul.f32 %v620, %v657
    %v666 = vmul.f32 %v622, %v658
    %v667 = vmul.f32 %v624, %v659
    %v668 = vmul.f32 %v626, %v660
    %v669 = vmul.f32 %v628, %v661
    %v670 = vmul.f32 %v630, %v662
    %v671 = vpack.c.bf16 %v663, %v663
    %v672 = vpack.c.bf16 %v664, %v664
    %v673 = vpack.c.bf16 %v665, %v665
    %v674 = vpack.c.bf16 %v666, %v666
    %v675 = vpack.c.bf16 %v667, %v667
    %v676 = vpack.c.bf16 %v668, %v668
    %v677 = vpack.c.bf16 %v669, %v669
    %v678 = vpack.c.bf16 %v670, %v670
    %679 = vrot.lane.b32.xlu0 %v182, 64
    %v680 = vpop.permute.xlu0 %679
    %v682 = vsel %vm193, %v671, 0
    %vm684 = vcmask 1043456
    %v686 = vsel %vm684, %v680, 0
    %688 = vmatprep.subr.bf16.mxu0 0
    %689 = vmatpush1.bf16.msra.mxu0 %v686
    %690 = vmatprep.subr.bf16.mxu0 0
    %691 = vmatpush1.bf16.msra.mxu0 0
    %692 = vmatprep.subr.bf16.mxu0 0
    %693 = vmatpush1.bf16.msra.mxu0 0
    %694 = vmatprep.subr.bf16.mxu0 0
    %695 = vmatpush1.bf16.msra.mxu0 0
    %696 = vmatprep.subr.bf16.mxu0 0
    %697 = vmatpush1.bf16.msra.mxu0 0
    %698 = vmatprep.subr.bf16.mxu0 0
    %699 = vmatpush1.bf16.msra.mxu0 0
    %700 = vmatprep.subr.bf16.mxu0 0
    %701 = vmatpush1.bf16.msra.mxu0 0
    %702 = vmatprep.subr.bf16.mxu0 0
    %703 = vmatpush1.bf16.msra.mxu0 0
    %704 = vmatprep.subr.bf16.mxu0 0
    %705 = vmatpush1.bf16.msra.mxu0 0
    %706 = vmatprep.subr.bf16.mxu0 0
    %707 = vmatpush1.bf16.msra.mxu0 0
    %708 = vmatprep.subr.bf16.mxu0 0
    %709 = vmatpush1.bf16.msra.mxu0 0
    %710 = vmatprep.subr.bf16.mxu0 0
    %711 = vmatpush1.bf16.msra.mxu0 0
    %712 = vmatprep.subr.bf16.mxu0 0
    %713 = vmatpush1.bf16.msra.mxu0 0
    %714 = vmatprep.subr.bf16.mxu0 0
    %715 = vmatpush1.bf16.msra.mxu0 0
    %716 = vmatprep.subr.bf16.mxu0 0
    %717 = vmatpush1.bf16.msra.mxu0 0
    %718 = vmatprep.subr.bf16.mxu0 0
    %719 = vmatpush1.bf16.msra.mxu0 0
    %720 = vmatprep.mubr.bf16.mxu0 0
    %721 = vmatmul.mubr.bf16.gmra.mrb[0].mxu0 %v682
    %v722 = vpop.f32.mrb[0].mxu0
    %v723 = vadd.f32 0.0, %v722
    %v724 = vpop.f32.mrb[0].mxu0
    %v725 = vpop.f32.mrb[0].mxu0
    %v726 = vpop.f32.mrb[0].mxu0
    %727 = vdwg.mxu0
    %728 = vrot.lane.b32.xlu0 %v183, 64
    %v729 = vpop.permute.xlu0 %728
    %v731 = vsel %vm193, %v672, 0
    %v734 = vsel %vm684, %v729, 0
    %736 = vmatprep.subr.bf16.mxu0 0
    %737 = vmatpush1.bf16.msra.mxu0 %v734
    %738 = vmatprep.subr.bf16.mxu0 0
    %739 = vmatpush1.bf16.msra.mxu0 0
    %740 = vmatprep.subr.bf16.mxu0 0
    %741 = vmatpush1.bf16.msra.mxu0 0
    %742 = vmatprep.subr.bf16.mxu0 0
    %743 = vmatpush1.bf16.msra.mxu0 0
    %744 = vmatprep.subr.bf16.mxu0 0
    %745 = vmatpush1.bf16.msra.mxu0 0
    %746 = vmatprep.subr.bf16.mxu0 0
    %747 = vmatpush1.bf16.msra.mxu0 0
    %748 = vmatprep.subr.bf16.mxu0 0
    %749 = vmatpush1.bf16.msra.mxu0 0
    %750 = vmatprep.subr.bf16.mxu0 0
    %751 = vmatpush1.bf16.msra.mxu0 0
    %752 = vmatprep.subr.bf16.mxu0 0
    %753 = vmatpush1.bf16.msra.mxu0 0
    %754 = vmatprep.subr.bf16.mxu0 0
    %755 = vmatpush1.bf16.msra.mxu0 0
    %756 = vmatprep.subr.bf16.mxu0 0
    %757 = vmatpush1.bf16.msra.mxu0 0
    %758 = vmatprep.subr.bf16.mxu0 0
    %759 = vmatpush1.bf16.msra.mxu0 0
    %760 = vmatprep.subr.bf16.mxu0 0
    %761 = vmatpush1.bf16.msra.mxu0 0
    %762 = vmatprep.subr.bf16.mxu0 0
    %763 = vmatpush1.bf16.msra.mxu0 0
    %764 = vmatprep.subr.bf16.mxu0 0
    %765 = vmatpush1.bf16.msra.mxu0 0
    %766 = vmatprep.subr.bf16.mxu0 0
    %767 = vmatpush1.bf16.msra.mxu0 0
    %768 = vmatprep.mubr.bf16.mxu0 0
    %769 = vmatmul.mubr.bf16.gmra.mrb[0].mxu0 %v731
    %v770 = vpop.f32.mrb[0].mxu0
    %v771 = vadd.f32 0.0, %v770
    %v772 = vpop.f32.mrb[0].mxu0
    %v773 = vpop.f32.mrb[0].mxu0
    %v774 = vpop.f32.mrb[0].mxu0
    %775 = vdwg.mxu0
    %776 = vrot.lane.b32.xlu0 %v184, 64
    %v777 = vpop.permute.xlu0 %776
    %v779 = vsel %vm193, %v673, 0
    %v782 = vsel %vm684, %v777, 0
    %784 = vmatprep.subr.bf16.mxu0 0
    %785 = vmatpush1.bf16.msra.mxu0 %v782
    %786 = vmatprep.subr.bf16.mxu0 0
    %787 = vmatpush1.bf16.msra.mxu0 0
    %788 = vmatprep.subr.bf16.mxu0 0
    %789 = vmatpush1.bf16.msra.mxu0 0
    %790 = vmatprep.subr.bf16.mxu0 0
    %791 = vmatpush1.bf16.msra.mxu0 0
    %792 = vmatprep.subr.bf16.mxu0 0
    %793 = vmatpush1.bf16.msra.mxu0 0
    %794 = vmatprep.subr.bf16.mxu0 0
    %795 = vmatpush1.bf16.msra.mxu0 0
    %796 = vmatprep.subr.bf16.mxu0 0
    %797 = vmatpush1.bf16.msra.mxu0 0
    %798 = vmatprep.subr.bf16.mxu0 0
    %799 = vmatpush1.bf16.msra.mxu0 0
    %800 = vmatprep.subr.bf16.mxu0 0
    %801 = vmatpush1.bf16.msra.mxu0 0
    %802 = vmatprep.subr.bf16.mxu0 0
    %803 = vmatpush1.bf16.msra.mxu0 0
    %804 = vmatprep.subr.bf16.mxu0 0
    %805 = vmatpush1.bf16.msra.mxu0 0
    %806 = vmatprep.subr.bf16.mxu0 0
    %807 = vmatpush1.bf16.msra.mxu0 0
    %808 = vmatprep.subr.bf16.mxu0 0
    %809 = vmatpush1.bf16.msra.mxu0 0
    %810 = vmatprep.subr.bf16.mxu0 0
    %811 = vmatpush1.bf16.msra.mxu0 0
    %812 = vmatprep.subr.bf16.mxu0 0
    %813 = vmatpush1.bf16.msra.mxu0 0
    %814 = vmatprep.subr.bf16.mxu0 0
    %815 = vmatpush1.bf16.msra.mxu0 0
    %816 = vmatprep.mubr.bf16.mxu0 0
    %817 = vmatmul.mubr.bf16.gmra.mrb[0].mxu0 %v779
    %v818 = vpop.f32.mrb[0].mxu0
    %v819 = vadd.f32 0.0, %v818
    %v820 = vpop.f32.mrb[0].mxu0
    %v821 = vpop.f32.mrb[0].mxu0
    %v822 = vpop.f32.mrb[0].mxu0
    %823 = vdwg.mxu0
    %824 = vrot.lane.b32.xlu0 %v185, 64
    %v825 = vpop.permute.xlu0 %824
    %v827 = vsel %vm193, %v674, 0
    %v830 = vsel %vm684, %v825, 0
    %832 = vmatprep.subr.bf16.mxu0 0
    %833 = vmatpush1.bf16.msra.mxu0 %v830
    %834 = vmatprep.subr.bf16.mxu0 0
    %835 = vmatpush1.bf16.msra.mxu0 0
    %836 = vmatprep.subr.bf16.mxu0 0
    %837 = vmatpush1.bf16.msra.mxu0 0
    %838 = vmatprep.subr.bf16.mxu0 0
    %839 = vmatpush1.bf16.msra.mxu0 0
    %840 = vmatprep.subr.bf16.mxu0 0
    %841 = vmatpush1.bf16.msra.mxu0 0
    %842 = vmatprep.subr.bf16.mxu0 0
    %843 = vmatpush1.bf16.msra.mxu0 0
    %844 = vmatprep.subr.bf16.mxu0 0
    %845 = vmatpush1.bf16.msra.mxu0 0
    %846 = vmatprep.subr.bf16.mxu0 0
    %847 = vmatpush1.bf16.msra.mxu0 0
    %848 = vmatprep.subr.bf16.mxu0 0
    %849 = vmatpush1.bf16.msra.mxu0 0
    %850 = vmatprep.subr.bf16.mxu0 0
    %851 = vmatpush1.bf16.msra.mxu0 0
    %852 = vmatprep.subr.bf16.mxu0 0
    %853 = vmatpush1.bf16.msra.mxu0 0
    %854 = vmatprep.subr.bf16.mxu0 0
    %855 = vmatpush1.bf16.msra.mxu0 0
    %856 = vmatprep.subr.bf16.mxu0 0
    %857 = vmatpush1.bf16.msra.mxu0 0
    %858 = vmatprep.subr.bf16.mxu0 0
    %859 = vmatpush1.bf16.msra.mxu0 0
    %860 = vmatprep.subr.bf16.mxu0 0
    %861 = vmatpush1.bf16.msra.mxu0 0
    %862 = vmatprep.subr.bf16.mxu0 0
    %863 = vmatpush1.bf16.msra.mxu0 0
    %864 = vmatprep.mubr.bf16.mxu0 0
    %865 = vmatmul.mubr.bf16.gmra.mrb[0].mxu0 %v827
    %v866 = vpop.f32.mrb[0].mxu0
    %v867 = vadd.f32 0.0, %v866
    %v868 = vpop.f32.mrb[0].mxu0
    %v869 = vpop.f32.mrb[0].mxu0
    %v870 = vpop.f32.mrb[0].mxu0
    %871 = vdwg.mxu0
    %872 = vrot.lane.b32.xlu0 %v186, 64
    %v873 = vpop.permute.xlu0 %872
    %v875 = vsel %vm193, %v675, 0
    %v878 = vsel %vm684, %v873, 0
    %880 = vmatprep.subr.bf16.mxu0 0
    %881 = vmatpush1.bf16.msra.mxu0 %v878
    %882 = vmatprep.subr.bf16.mxu0 0
    %883 = vmatpush1.bf16.msra.mxu0 0
    %884 = vmatprep.subr.bf16.mxu0 0
    %885 = vmatpush1.bf16.msra.mxu0 0
    %886 = vmatprep.subr.bf16.mxu0 0
    %887 = vmatpush1.bf16.msra.mxu0 0
    %888 = vmatprep.subr.bf16.mxu0 0
    %889 = vmatpush1.bf16.msra.mxu0 0
    %890 = vmatprep.subr.bf16.mxu0 0
    %891 = vmatpush1.bf16.msra.mxu0 0
    %892 = vmatprep.subr.bf16.mxu0 0
    %893 = vmatpush1.bf16.msra.mxu0 0
    %894 = vmatprep.subr.bf16.mxu0 0
    %895 = vmatpush1.bf16.msra.mxu0 0
    %896 = vmatprep.subr.bf16.mxu0 0
    %897 = vmatpush1.bf16.msra.mxu0 0
    %898 = vmatprep.subr.bf16.mxu0 0
    %899 = vmatpush1.bf16.msra.mxu0 0
    %900 = vmatprep.subr.bf16.mxu0 0
    %901 = vmatpush1.bf16.msra.mxu0 0
    %902 = vmatprep.subr.bf16.mxu0 0
    %903 = vmatpush1.bf16.msra.mxu0 0
    %904 = vmatprep.subr.bf16.mxu0 0
    %905 = vmatpush1.bf16.msra.mxu0 0
    %906 = vmatprep.subr.bf16.mxu0 0
    %907 = vmatpush1.bf16.msra.mxu0 0
    %908 = vmatprep.subr.bf16.mxu0 0
    %909 = vmatpush1.bf16.msra.mxu0 0
    %910 = vmatprep.subr.bf16.mxu0 0
    %911 = vmatpush1.bf16.msra.mxu0 0
    %912 = vmatprep.mubr.bf16.mxu0 0
    %913 = vmatmul.mubr.bf16.gmra.mrb[0].mxu0 %v875
    %v914 = vpop.f32.mrb[0].mxu0
    %v915 = vadd.f32 0.0, %v914
    %v916 = vpop.f32.mrb[0].mxu0
    %v917 = vpop.f32.mrb[0].mxu0
    %v918 = vpop.f32.mrb[0].mxu0
    %919 = vdwg.mxu0
    %920 = vrot.lane.b32.xlu0 %v187, 64
    %v921 = vpop.permute.xlu0 %920
    %v923 = vsel %vm193, %v676, 0
    %v926 = vsel %vm684, %v921, 0
    %928 = vmatprep.subr.bf16.mxu0 0
    %929 = vmatpush1.bf16.msra.mxu0 %v926
    %930 = vmatprep.subr.bf16.mxu0 0
    %931 = vmatpush1.bf16.msra.mxu0 0
    %932 = vmatprep.subr.bf16.mxu0 0
    %933 = vmatpush1.bf16.msra.mxu0 0
    %934 = vmatprep.subr.bf16.mxu0 0
    %935 = vmatpush1.bf16.msra.mxu0 0
    %936 = vmatprep.subr.bf16.mxu0 0
    %937 = vmatpush1.bf16.msra.mxu0 0
    %938 = vmatprep.subr.bf16.mxu0 0
    %939 = vmatpush1.bf16.msra.mxu0 0
    %940 = vmatprep.subr.bf16.mxu0 0
    %941 = vmatpush1.bf16.msra.mxu0 0
    %942 = vmatprep.subr.bf16.mxu0 0
    %943 = vmatpush1.bf16.msra.mxu0 0
    %944 = vmatprep.subr.bf16.mxu0 0
    %945 = vmatpush1.bf16.msra.mxu0 0
    %946 = vmatprep.subr.bf16.mxu0 0
    %947 = vmatpush1.bf16.msra.mxu0 0
    %948 = vmatprep.subr.bf16.mxu0 0
    %949 = vmatpush1.bf16.msra.mxu0 0
    %950 = vmatprep.subr.bf16.mxu0 0
    %951 = vmatpush1.bf16.msra.mxu0 0
    %952 = vmatprep.subr.bf16.mxu0 0
    %953 = vmatpush1.bf16.msra.mxu0 0
    %954 = vmatprep.subr.bf16.mxu0 0
    %955 = vmatpush1.bf16.msra.mxu0 0
    %956 = vmatprep.subr.bf16.mxu0 0
    %957 = vmatpush1.bf16.msra.mxu0 0
    %958 = vmatprep.subr.bf16.mxu0 0
    %959 = vmatpush1.bf16.msra.mxu0 0
    %960 = vmatprep.mubr.bf16.mxu0 0
    %961 = vmatmul.mubr.bf16.gmra.mrb[0].mxu0 %v923
    %v962 = vpop.f32.mrb[0].mxu0
    %v963 = vadd.f32 0.0, %v962
    %v964 = vpop.f32.mrb[0].mxu0
    %v965 = vpop.f32.mrb[0].mxu0
    %v966 = vpop.f32.mrb[0].mxu0
    %967 = vdwg.mxu0
    %968 = vrot.lane.b32.xlu0 %v188, 64
    %v969 = vpop.permute.xlu0 %968
    %v971 = vsel %vm193, %v677, 0
    %v974 = vsel %vm684, %v969, 0
    %976 = vmatprep.subr.bf16.mxu0 0
    %977 = vmatpush1.bf16.msra.mxu0 %v974
    %978 = vmatprep.subr.bf16.mxu0 0
    %979 = vmatpush1.bf16.msra.mxu0 0
    %980 = vmatprep.subr.bf16.mxu0 0
    %981 = vmatpush1.bf16.msra.mxu0 0
    %982 = vmatprep.subr.bf16.mxu0 0
    %983 = vmatpush1.bf16.msra.mxu0 0
    %984 = vmatprep.subr.bf16.mxu0 0
    %985 = vmatpush1.bf16.msra.mxu0 0
    %986 = vmatprep.subr.bf16.mxu0 0
    %987 = vmatpush1.bf16.msra.mxu0 0
    %988 = vmatprep.subr.bf16.mxu0 0
    %989 = vmatpush1.bf16.msra.mxu0 0
    %990 = vmatprep.subr.bf16.mxu0 0
    %991 = vmatpush1.bf16.msra.mxu0 0
    %992 = vmatprep.subr.bf16.mxu0 0
    %993 = vmatpush1.bf16.msra.mxu0 0
    %994 = vmatprep.subr.bf16.mxu0 0
    %995 = vmatpush1.bf16.msra.mxu0 0
    %996 = vmatprep.subr.bf16.mxu0 0
    %997 = vmatpush1.bf16.msra.mxu0 0
    %998 = vmatprep.subr.bf16.mxu0 0
    %999 = vmatpush1.bf16.msra.mxu0 0
    %1000 = vmatprep.subr.bf16.mxu0 0
    %1001 = vmatpush1.bf16.msra.mxu0 0
    %1002 = vmatprep.subr.bf16.mxu0 0
    %1003 = vmatpush1.bf16.msra.mxu0 0
    %1004 = vmatprep.subr.bf16.mxu0 0
    %1005 = vmatpush1.bf16.msra.mxu0 0
    %1006 = vmatprep.subr.bf16.mxu0 0
    %1007 = vmatpush1.bf16.msra.mxu0 0
    %1008 = vmatprep.mubr.bf16.mxu0 0
    %1009 = vmatmul.mubr.bf16.gmra.mrb[0].mxu0 %v971
    %v1010 = vpop.f32.mrb[0].mxu0
    %v1011 = vadd.f32 0.0, %v1010
    %v1012 = vpop.f32.mrb[0].mxu0
    %v1013 = vpop.f32.mrb[0].mxu0
    %v1014 = vpop.f32.mrb[0].mxu0
    %1015 = vdwg.mxu0
    %1016 = vrot.lane.b32.xlu0 %v189, 64
    %v1017 = vpop.permute.xlu0 %1016
    %v1019 = vsel %vm193, %v678, 0
    %v1022 = vsel %vm684, %v1017, 0
    %1024 = vmatprep.subr.bf16.mxu0 0
    %1025 = vmatpush1.bf16.msra.mxu0 %v1022
    %1026 = vmatprep.subr.bf16.mxu0 0
    %1027 = vmatpush1.bf16.msra.mxu0 0
    %1028 = vmatprep.subr.bf16.mxu0 0
    %1029 = vmatpush1.bf16.msra.mxu0 0
    %1030 = vmatprep.subr.bf16.mxu0 0
    %1031 = vmatpush1.bf16.msra.mxu0 0
    %1032 = vmatprep.subr.bf16.mxu0 0
    %1033 = vmatpush1.bf16.msra.mxu0 0
    %1034 = vmatprep.subr.bf16.mxu0 0
    %1035 = vmatpush1.bf16.msra.mxu0 0
    %1036 = vmatprep.subr.bf16.mxu0 0
    %1037 = vmatpush1.bf16.msra.mxu0 0
    %1038 = vmatprep.subr.bf16.mxu0 0
    %1039 = vmatpush1.bf16.msra.mxu0 0
    %1040 = vmatprep.subr.bf16.mxu0 0
    %1041 = vmatpush1.bf16.msra.mxu0 0
    %1042 = vmatprep.subr.bf16.mxu0 0
    %1043 = vmatpush1.bf16.msra.mxu0 0
    %1044 = vmatprep.subr.bf16.mxu0 0
    %1045 = vmatpush1.bf16.msra.mxu0 0
    %1046 = vmatprep.subr.bf16.mxu0 0
    %1047 = vmatpush1.bf16.msra.mxu0 0
    %1048 = vmatprep.subr.bf16.mxu0 0
    %1049 = vmatpush1.bf16.msra.mxu0 0
    %1050 = vmatprep.subr.bf16.mxu0 0
    %1051 = vmatpush1.bf16.msra.mxu0 0
    %1052 = vmatprep.subr.bf16.mxu0 0
    %1053 = vmatpush1.bf16.msra.mxu0 0
    %1054 = vmatprep.subr.bf16.mxu0 0
    %1055 = vmatpush1.bf16.msra.mxu0 0
    %1056 = vmatprep.mubr.bf16.mxu0 0
    %1057 = vmatmul.mubr.bf16.gmra.mrb[0].mxu0 %v1019
    %v1058 = vpop.f32.mrb[0].mxu0
    %v1059 = vadd.f32 0.0, %v1058
    %v1060 = vpop.f32.mrb[0].mxu0
    %v1061 = vpop.f32.mrb[0].mxu0
    %v1062 = vpop.f32.mrb[0].mxu0
    %1063 = vdwg.mxu0
    %v1064 = vpack.c.bf16 %v771, %v723
    %v1065 = vpack.c.bf16 %v867, %v819
    %v1066 = vpack.c.bf16 %v963, %v915
    %v1067 = vpack.c.bf16 %v1059, %v1011
    %v1068 = vld [vmem:[%s5] sm:$0xf]
    %v1069 = vld [vmem:[%s5 + $0x4] sm:$0xf]
    %v1070 = vld [vmem:[%s5 + $0x8] sm:$0xf]
    %v1071 = vld [vmem:[%s5 + $0xc] sm:$0xf]
    %v1073 = vsel %vm193, %v1064, 0
    %v1076 = vsel %vm684, %v1068, 0
    %1078 = vmatprep.subr.bf16.mxu0 0
    %1079 = vmatpush1.bf16.msra.mxu0 %v1076
    %1080 = vmatprep.subr.bf16.mxu0 0
    %1081 = vmatpush1.bf16.msra.mxu0 0
    %1082 = vmatprep.subr.bf16.mxu0 0
    %1083 = vmatpush1.bf16.msra.mxu0 0
    %1084 = vmatprep.subr.bf16.mxu0 0
    %1085 = vmatpush1.bf16.msra.mxu0 0
    %1086 = vmatprep.subr.bf16.mxu0 0
    %1087 = vmatpush1.bf16.msra.mxu0 0
    %1088 = vmatprep.subr.bf16.mxu0 0
    %1089 = vmatpush1.bf16.msra.mxu0 0
    %1090 = vmatprep.subr.bf16.mxu0 0
    %1091 = vmatpush1.bf16.msra.mxu0 0
    %1092 = vmatprep.subr.bf16.mxu0 0
    %1093 = vmatpush1.bf16.msra.mxu0 0
    %1094 = vmatprep.subr.bf16.mxu0 0
    %1095 = vmatpush1.bf16.msra.mxu0 0
    %1096 = vmatprep.subr.bf16.mxu0 0
    %1097 = vmatpush1.bf16.msra.mxu0 0
    %1098 = vmatprep.subr.bf16.mxu0 0
    %1099 = vmatpush1.bf16.msra.mxu0 0
    %1100 = vmatprep.subr.bf16.mxu0 0
    %1101 = vmatpush1.bf16.msra.mxu0 0
    %1102 = vmatprep.subr.bf16.mxu0 0
    %1103 = vmatpush1.bf16.msra.mxu0 0
    %1104 = vmatprep.subr.bf16.mxu0 0
    %1105 = vmatpush1.bf16.msra.mxu0 0
    %1106 = vmatprep.subr.bf16.mxu0 0
    %1107 = vmatpush1.bf16.msra.mxu0 0
    %1108 = vmatprep.subr.bf16.mxu0 0
    %1109 = vmatpush1.bf16.msra.mxu0 0
    %1110 = vmatprep.mubr.bf16.mxu0 0
    %1111 = vmatmul.mubr.bf16.gmra.mrb[0].mxu0 %v1073
    %v1112 = vpop.f32.mrb[0].mxu0
    %v1113 = vadd.f32 0.0, %v1112
    %v1114 = vpop.f32.mrb[0].mxu0
    %v1115 = vpop.f32.mrb[0].mxu0
    %v1116 = vadd.f32 0.0, %v1115
    %v1117 = vpop.f32.mrb[0].mxu0
    %1118 = vdwg.mxu0
    %v1120 = vsel %vm193, %v1065, 0
    %v1123 = vsel %vm684, %v1069, 0
    %1125 = vmatprep.subr.bf16.mxu0 0
    %1126 = vmatpush1.bf16.msra.mxu0 %v1123
    %1127 = vmatprep.subr.bf16.mxu0 0
    %1128 = vmatpush1.bf16.msra.mxu0 0
    %1129 = vmatprep.subr.bf16.mxu0 0
    %1130 = vmatpush1.bf16.msra.mxu0 0
    %1131 = vmatprep.subr.bf16.mxu0 0
    %1132 = vmatpush1.bf16.msra.mxu0 0
    %1133 = vmatprep.subr.bf16.mxu0 0
    %1134 = vmatpush1.bf16.msra.mxu0 0
    %1135 = vmatprep.subr.bf16.mxu0 0
    %1136 = vmatpush1.bf16.msra.mxu0 0
    %1137 = vmatprep.subr.bf16.mxu0 0
    %1138 = vmatpush1.bf16.msra.mxu0 0
    %1139 = vmatprep.subr.bf16.mxu0 0
    %1140 = vmatpush1.bf16.msra.mxu0 0
    %1141 = vmatprep.subr.bf16.mxu0 0
    %1142 = vmatpush1.bf16.msra.mxu0 0
    %1143 = vmatprep.subr.bf16.mxu0 0
    %1144 = vmatpush1.bf16.msra.mxu0 0
    %1145 = vmatprep.subr.bf16.mxu0 0
    %1146 = vmatpush1.bf16.msra.mxu0 0
    %1147 = vmatprep.subr.bf16.mxu0 0
    %1148 = vmatpush1.bf16.msra.mxu0 0
    %1149 = vmatprep.subr.bf16.mxu0 0
    %1150 = vmatpush1.bf16.msra.mxu0 0
    %1151 = vmatprep.subr.bf16.mxu0 0
    %1152 = vmatpush1.bf16.msra.mxu0 0
    %1153 = vmatprep.subr.bf16.mxu0 0
    %1154 = vmatpush1.bf16.msra.mxu0 0
    %1155 = vmatprep.subr.bf16.mxu0 0
    %1156 = vmatpush1.bf16.msra.mxu0 0
    %1157 = vmatprep.mubr.bf16.mxu0 0
    %1158 = vmatmul.mubr.bf16.gmra.mrb[0].mxu0 %v1120
    %v1159 = vpop.f32.mrb[0].mxu0
    %v1160 = vadd.f32 0.0, %v1159
    %v1161 = vpop.f32.mrb[0].mxu0
    %v1162 = vpop.f32.mrb[0].mxu0
    %v1163 = vadd.f32 0.0, %v1162
    %v1164 = vpop.f32.mrb[0].mxu0
    %1165 = vdwg.mxu0
    %v1167 = vsel %vm193, %v1066, 0
    %v1170 = vsel %vm684, %v1070, 0
    %1172 = vmatprep.subr.bf16.mxu0 0
    %1173 = vmatpush1.bf16.msra.mxu0 %v1170
    %1174 = vmatprep.subr.bf16.mxu0 0
    %1175 = vmatpush1.bf16.msra.mxu0 0
    %1176 = vmatprep.subr.bf16.mxu0 0
    %1177 = vmatpush1.bf16.msra.mxu0 0
    %1178 = vmatprep.subr.bf16.mxu0 0
    %1179 = vmatpush1.bf16.msra.mxu0 0
    %1180 = vmatprep.subr.bf16.mxu0 0
    %1181 = vmatpush1.bf16.msra.mxu0 0
    %1182 = vmatprep.subr.bf16.mxu0 0
    %1183 = vmatpush1.bf16.msra.mxu0 0
    %1184 = vmatprep.subr.bf16.mxu0 0
    %1185 = vmatpush1.bf16.msra.mxu0 0
    %1186 = vmatprep.subr.bf16.mxu0 0
    %1187 = vmatpush1.bf16.msra.mxu0 0
    %1188 = vmatprep.subr.bf16.mxu0 0
    %1189 = vmatpush1.bf16.msra.mxu0 0
    %1190 = vmatprep.subr.bf16.mxu0 0
    %1191 = vmatpush1.bf16.msra.mxu0 0
    %1192 = vmatprep.subr.bf16.mxu0 0
    %1193 = vmatpush1.bf16.msra.mxu0 0
    %1194 = vmatprep.subr.bf16.mxu0 0
    %1195 = vmatpush1.bf16.msra.mxu0 0
    %1196 = vmatprep.subr.bf16.mxu0 0
    %1197 = vmatpush1.bf16.msra.mxu0 0
    %1198 = vmatprep.subr.bf16.mxu0 0
    %1199 = vmatpush1.bf16.msra.mxu0 0
    %1200 = vmatprep.subr.bf16.mxu0 0
    %1201 = vmatpush1.bf16.msra.mxu0 0
    %1202 = vmatprep.subr.bf16.mxu0 0
    %1203 = vmatpush1.bf16.msra.mxu0 0
    %1204 = vmatprep.mubr.bf16.mxu0 0
    %1205 = vmatmul.mubr.bf16.gmra.mrb[0].mxu0 %v1167
    %v1206 = vpop.f32.mrb[0].mxu0
    %v1207 = vadd.f32 0.0, %v1206
    %v1208 = vpop.f32.mrb[0].mxu0
    %v1209 = vpop.f32.mrb[0].mxu0
    %v1210 = vadd.f32 0.0, %v1209
    %v1211 = vpop.f32.mrb[0].mxu0
    %1212 = vdwg.mxu0
    %v1214 = vsel %vm193, %v1067, 0
    %v1217 = vsel %vm684, %v1071, 0
    %1219 = vmatprep.subr.bf16.mxu0 0
    %1220 = vmatpush1.bf16.msra.mxu0 %v1217
    %1221 = vmatprep.subr.bf16.mxu0 0
    %1222 = vmatpush1.bf16.msra.mxu0 0
    %1223 = vmatprep.subr.bf16.mxu0 0
    %1224 = vmatpush1.bf16.msra.mxu0 0
    %1225 = vmatprep.subr.bf16.mxu0 0
    %1226 = vmatpush1.bf16.msra.mxu0 0
    %1227 = vmatprep.subr.bf16.mxu0 0
    %1228 = vmatpush1.bf16.msra.mxu0 0
    %1229 = vmatprep.subr.bf16.mxu0 0
    %1230 = vmatpush1.bf16.msra.mxu0 0
    %1231 = vmatprep.subr.bf16.mxu0 0
    %1232 = vmatpush1.bf16.msra.mxu0 0
    %1233 = vmatprep.subr.bf16.mxu0 0
    %1234 = vmatpush1.bf16.msra.mxu0 0
    %1235 = vmatprep.subr.bf16.mxu0 0
    %1236 = vmatpush1.bf16.msra.mxu0 0
    %1237 = vmatprep.subr.bf16.mxu0 0
    %1238 = vmatpush1.bf16.msra.mxu0 0
    %1239 = vmatprep.subr.bf16.mxu0 0
    %1240 = vmatpush1.bf16.msra.mxu0 0
    %1241 = vmatprep.subr.bf16.mxu0 0
    %1242 = vmatpush1.bf16.msra.mxu0 0
    %1243 = vmatprep.subr.bf16.mxu0 0
    %1244 = vmatpush1.bf16.msra.mxu0 0
    %1245 = vmatprep.subr.bf16.mxu0 0
    %1246 = vmatpush1.bf16.msra.mxu0 0
    %1247 = vmatprep.subr.bf16.mxu0 0
    %1248 = vmatpush1.bf16.msra.mxu0 0
    %1249 = vmatprep.subr.bf16.mxu0 0
    %1250 = vmatpush1.bf16.msra.mxu0 0
    %1251 = vmatprep.mubr.bf16.mxu0 0
    %1252 = vmatmul.mubr.bf16.gmra.mrb[0].mxu0 %v1214
    %v1253 = vpop.f32.mrb[0].mxu0
    %v1254 = vadd.f32 0.0, %v1253
    %v1255 = vpop.f32.mrb[0].mxu0
    %v1256 = vpop.f32.mrb[0].mxu0
    %v1257 = vadd.f32 0.0, %v1256
    %v1258 = vpop.f32.mrb[0].mxu0
    %1259 = vdwg.mxu0
    %v1260 = vsel %vm50, %v1113, 0.0
    %v1261 = vsel %vm50, %v1160, 0.0
    %v1262 = vadd.f32 %v1260, %v1261
    %v1263 = vsel %vm50, %v1207, 0.0
    %v1264 = vadd.f32 %v1262, %v1263
    %v1265 = vsel %vm50, %v1254, 0.0
    %v1266 = vadd.f32 %v1264, %v1265
    %v1267 = vsel %vm50, %v1116, 0.0
    %v1268 = vsel %vm50, %v1163, 0.0
    %v1269 = vadd.f32 %v1267, %v1268
    %v1270 = vsel %vm50, %v1210, 0.0
    %v1271 = vadd.f32 %v1269, %v1270
    %v1272 = vsel %vm50, %v1257, 0.0
    %v1273 = vadd.f32 %v1271, %v1272
    %v1274 = vld [vmem:[%s6] sm:$0x1]
    %v1276 = vlaneseq
    %v1277 = vshrl.u32 %v1276, 7
    %v1278 = vsub.s32 0, %v1277
    %v1279 = vrot.slane %v1274, %v1278
    %v1281 = vadd.f32 %v1266, %v1279
    %v1282 = vadd.f32 %v1273, %v1279
    %v1283 = vadd.f32 %v46, %v1281
    %v1284 = vadd.f32 %v47, %v1282
    %v1285 = vld [vmem:[%s7] sm:$0x1]
    %v1286 = vld [vmem:[%s8] sm:$0x1]
    %v1287 = vsel %vm50, %v1283, 0.0
    %1288 = vadd.xlane.f32.xlu0 %v1287
    %v1289 = vpop.xlane.xlu0 %1288
    %v1290 = vsel %vm50, %v1284, 0.0
    %1291 = vadd.xlane.f32.xlu0 %v1290
    %v1292 = vpop.xlane.xlu0 %1291
    %v1293 = vmul.f32 %v1289, %v57
    %v1294 = vmul.f32 %v1292, %v57
    %v1295 = vsub.f32 %v1283, %v1293
    %v1296 = vsub.f32 %v1284, %v1294
    %v1297 = vmul.f32 %v1295, %v1295
    %v1298 = vmul.f32 %v1296, %v1296
    %v1299 = vsel %vm50, %v1297, 0.0
    %1300 = vadd.xlane.f32.xlu0 %v1299
    %v1301 = vpop.xlane.xlu0 %1300
    %v1302 = vsel %vm50, %v1298, 0.0
    %1303 = vadd.xlane.f32.xlu0 %v1302
    %v1304 = vpop.xlane.xlu0 %1303
    %v1305 = vmul.f32 %v1301, %v57
    %v1306 = vmul.f32 %v1304, %v57
    %v1307 = vadd.f32 %v1305, 1e-05
    %v1308 = vadd.f32 %v1306, 1e-05
    %v1309 = vrsqrt.pop %v1307
    %v1310 = vrsqrt.pop %v1308
    %v1311 = vmul.f32 %v1295, %v1309
    %v1312 = vmul.f32 %v1296, %v1310
    %v1314 = vlaneseq
    %v1315 = vshrl.u32 %v1314, 7
    %v1316 = vsub.s32 0, %v1315
    %v1317 = vrot.slane %v1285, %v1316
    %v1319 = vmul.f32 %v1311, %v1317
    %v1320 = vmul.f32 %v1312, %v1317
    %v1322 = vlaneseq
    %v1323 = vshrl.u32 %v1322, 7
    %v1324 = vsub.s32 0, %v1323
    %v1325 = vrot.slane %v1286, %v1324
    %v1327 = vadd.f32 %v1319, %v1325
    %v1328 = vadd.f32 %v1320, %v1325
    %v1329 = vpack.c.bf16 %v1328, %v1327
    %v1330 = vld [vmem:[%s9] sm:$0xf]
    %v1331 = vld [vmem:[%s9 + $0x4] sm:$0xf]
    %v1332 = vld [vmem:[%s9 + $0x8] sm:$0xf]
    %v1333 = vld [vmem:[%s9 + $0xc] sm:$0xf]
    %v1334 = vld [vmem:[%s10] sm:$0x1]
    %v1336 = vlaneseq
    %v1337 = vshrl.u32 %v1336, 7
    %v1338 = vsub.s32 0, %v1337
    %v1339 = vrot.slane %v1334, %v1338
    %v1345 = vunpack.c.l.b16 %v1330
    %v1346 = vunpack.c.l.b16 %v1331
    %v1347 = vunpack.c.l.b16 %v1332
    %v1348 = vunpack.c.l.b16 %v1333
    %v1349 = vpack.c.b16 %v1346, %v1345
    %v1350 = vpack.c.b16 %v1348, %v1347
    %v1354 = vsel %vm50, %v1329, 0
    %1356 = vmatprep.subr.bf16.mxu0 0
    %1357 = vmatpush1.bf16.msra.mxu0 %v1349
    %1358 = vmatprep.subr.bf16.mxu0 0
    %1359 = vmatpush1.bf16.msra.mxu0 %v1350
    %1360 = vmatprep.subr.bf16.mxu0 0
    %1361 = vmatpush1.bf16.msra.mxu0 0
    %1362 = vmatprep.subr.bf16.mxu0 0
    %1363 = vmatpush1.bf16.msra.mxu0 0
    %1364 = vmatprep.subr.bf16.mxu0 0
    %1365 = vmatpush1.bf16.msra.mxu0 0
    %1366 = vmatprep.subr.bf16.mxu0 0
    %1367 = vmatpush1.bf16.msra.mxu0 0
    %1368 = vmatprep.subr.bf16.mxu0 0
    %1369 = vmatpush1.bf16.msra.mxu0 0
    %1370 = vmatprep.subr.bf16.mxu0 0
    %1371 = vmatpush1.bf16.msra.mxu0 0
    %1372 = vmatprep.subr.bf16.mxu0 0
    %1373 = vmatpush1.bf16.msra.mxu0 0
    %1374 = vmatprep.subr.bf16.mxu0 0
    %1375 = vmatpush1.bf16.msra.mxu0 0
    %1376 = vmatprep.subr.bf16.mxu0 0
    %1377 = vmatpush1.bf16.msra.mxu0 0
    %1378 = vmatprep.subr.bf16.mxu0 0
    %1379 = vmatpush1.bf16.msra.mxu0 0
    %1380 = vmatprep.subr.bf16.mxu0 0
    %1381 = vmatpush1.bf16.msra.mxu0 0
    %1382 = vmatprep.subr.bf16.mxu0 0
    %1383 = vmatpush1.bf16.msra.mxu0 0
    %1384 = vmatprep.subr.bf16.mxu0 0
    %1385 = vmatpush1.bf16.msra.mxu0 0
    %1386 = vmatprep.subr.bf16.mxu0 0
    %1387 = vmatpush1.bf16.msra.mxu0 0
    %1388 = vmatprep.mubr.bf16.mxu0 0
    %1389 = vmatmul.mubr.bf16.gmra.mrb[0].mxu0 %v1354
    %v1390 = vpop.f32.mrb[0].mxu0
    %v1391 = vadd.f32 %v1339, %v1390
    %v1392 = vpop.f32.mrb[0].mxu0
    %v1393 = vpop.f32.mrb[0].mxu0
    %v1394 = vadd.f32 %v1339, %v1393
    %v1395 = vpop.f32.mrb[0].mxu0
    %1396 = vdwg.mxu0
    %v1397 = vmax.f32 %v1391, 0.0
    %v1398 = vmax.f32 %v1394, 0.0
    %v1399 = vpack.c.bf16 %v1398, %v1397
    %v1400 = vld [vmem:[%s11] sm:$0xf]
    %v1401 = vld [vmem:[%s11 + $0x4] sm:$0xf]
    %v1402 = vld [vmem:[%s11 + $0x8] sm:$0xf]
    %v1403 = vld [vmem:[%s11 + $0xc] sm:$0xf]
    %v1404 = vld [vmem:[%s11 + $0x10] sm:$0xf]
    %v1405 = vld [vmem:[%s11 + $0x14] sm:$0xf]
    %v1406 = vld [vmem:[%s11 + $0x18] sm:$0xf]
    %v1407 = vld [vmem:[%s11 + $0x1c] sm:$0xf]
    %v1408 = vld [vmem:[%s11 + $0x20] sm:$0xf]
    %v1409 = vld [vmem:[%s11 + $0x24] sm:$0xf]
    %v1410 = vld [vmem:[%s11 + $0x28] sm:$0xf]
    %v1411 = vld [vmem:[%s11 + $0x2c] sm:$0xf]
    %v1412 = vld [vmem:[%s11 + $0x30] sm:$0xf]
    %v1413 = vld [vmem:[%s11 + $0x34] sm:$0xf]
    %v1414 = vld [vmem:[%s11 + $0x38] sm:$0xf]
    %v1415 = vld [vmem:[%s11 + $0x3c] sm:$0xf]
    %v1416 = vld [vmem:[%s12] sm:$0x1]
    %v1418 = vlaneseq
    %v1419 = vshrl.u32 %v1418, 7
    %v1420 = vsub.s32 0, %v1419
    %v1421 = vrot.slane %v1416, %v1420
    %v1439 = vunpack.c.l.b16 %v1400
    %v1440 = vunpack.c.l.b16 %v1401
    %v1441 = vunpack.c.l.b16 %v1402
    %v1442 = vunpack.c.l.b16 %v1403
    %v1443 = vunpack.c.l.b16 %v1404
    %v1444 = vunpack.c.l.b16 %v1405
    %v1445 = vunpack.c.l.b16 %v1406
    %v1446 = vunpack.c.l.b16 %v1407
    %v1447 = vunpack.c.l.b16 %v1408
    %v1448 = vunpack.c.l.b16 %v1409
    %v1449 = vunpack.c.l.b16 %v1410
    %v1450 = vunpack.c.l.b16 %v1411
    %v1451 = vunpack.c.l.b16 %v1412
    %v1452 = vunpack.c.l.b16 %v1413
    %v1453 = vunpack.c.l.b16 %v1414
    %v1454 = vunpack.c.l.b16 %v1415
    %v1455 = vpack.c.b16 %v1440, %v1439
    %v1456 = vpack.c.b16 %v1442, %v1441
    %v1457 = vpack.c.b16 %v1444, %v1443
    %v1458 = vpack.c.b16 %v1446, %v1445
    %v1459 = vpack.c.b16 %v1448, %v1447
    %v1460 = vpack.c.b16 %v1450, %v1449
    %v1461 = vpack.c.b16 %v1452, %v1451
    %v1462 = vpack.c.b16 %v1454, %v1453
    %1471 = vmatprep.subr.bf16.mxu0 0
    %1472 = vmatpush1.bf16.msra.mxu0 %v1455
    %1473 = vmatprep.subr.bf16.mxu0 0
    %1474 = vmatpush1.bf16.msra.mxu0 %v1456
    %1475 = vmatprep.subr.bf16.mxu0 0
    %1476 = vmatpush1.bf16.msra.mxu0 %v1457
    %1477 = vmatprep.subr.bf16.mxu0 0
    %1478 = vmatpush1.bf16.msra.mxu0 %v1458
    %1479 = vmatprep.subr.bf16.mxu0 0
    %1480 = vmatpush1.bf16.msra.mxu0 %v1459
    %1481 = vmatprep.subr.bf16.mxu0 0
    %1482 = vmatpush1.bf16.msra.mxu0 %v1460
    %1483 = vmatprep.subr.bf16.mxu0 0
    %1484 = vmatpush1.bf16.msra.mxu0 %v1461
    %1485 = vmatprep.subr.bf16.mxu0 0
    %1486 = vmatpush1.bf16.msra.mxu0 %v1462
    %1487 = vmatprep.subr.bf16.mxu0 0
    %1488 = vmatpush1.bf16.msra.mxu0 0
    %1489 = vmatprep.subr.bf16.mxu0 0
    %1490 = vmatpush1.bf16.msra.mxu0 0
    %1491 = vmatprep.subr.bf16.mxu0 0
    %1492 = vmatpush1.bf16.msra.mxu0 0
    %1493 = vmatprep.subr.bf16.mxu0 0
    %1494 = vmatpush1.bf16.msra.mxu0 0
    %1495 = vmatprep.subr.bf16.mxu0 0
    %1496 = vmatpush1.bf16.msra.mxu0 0
    %1497 = vmatprep.subr.bf16.mxu0 0
    %1498 = vmatpush1.bf16.msra.mxu0 0
    %1499 = vmatprep.subr.bf16.mxu0 0
    %1500 = vmatpush1.bf16.msra.mxu0 0
    %1501 = vmatprep.subr.bf16.mxu0 0
    %1502 = vmatpush1.bf16.msra.mxu0 0
    %1503 = vmatprep.mubr.bf16.mxu0 0
    %1504 = vmatmul.mubr.bf16.gmra.mrb[0].mxu0 %v1399
    %v1505 = vpop.f32.mrb[0].mxu0
    %v1506 = vadd.f32 %v1421, %v1505
    %v1507 = vpop.f32.mrb[0].mxu0
    %v1508 = vpop.f32.mrb[0].mxu0
    %v1509 = vadd.f32 %v1421, %v1508
    %v1510 = vpop.f32.mrb[0].mxu0
    %1511 = vdwg.mxu0
    %v1512 = vadd.f32 %v1283, %v1506
    %v1513 = vadd.f32 %v1284, %v1509
    %1514 = vst.msk [vmem:[#allocation2] sm:$0xff] %vm50, %v1512
    %1515 = vst.msk [vmem:[#allocation2 + $0x8] sm:$0xff] %vm50, %v1513
    // Predicated region
    $region54: #{tpu_custom_call.1} parent=1 // pred_check
      _
    $region55: #{tpu_custom_call.1} parent=1 // pred_check_branch
      %1517 = sbr.rel (0) target = $region57
    $region56: #{tpu_custom_call.1} parent=1 // pred_region
      %s1519 = ssub.s32 256, 256
      %1520 = vsyncadd [#allocation3], %s1519
      %s1521 = sshll.u32 [#allocation2], 4
      %s1522 = int_to_ptr.vmem [resolvable:$true] %s1521
      %1527 = dma.vmem_to_hbm [thread:$0]  %s1522, 256, %s13, [#allocation3], 128, 128, 8
    $region57: #{tpu_custom_call.1} parent=1 // pred_fallthru
      _
    // Predicated region
    $region58: #{tpu_custom_call.1} parent=1 // pred_check
      _
    $region59: #{tpu_custom_call.1} parent=1 // pred_check_branch
      %1529 = sbr.rel (0) target = $region61
    $region60: #{tpu_custom_call.1} parent=1 // pred_region
      %1530 = dma.done [#allocation3], 256
    $region61: #{tpu_custom_call.1} parent=1 // pred_fallthru
      _
    %1531 = vsyncpa [#allocation3], 1

</llo_original>
